<compile_context>
chip_gen: v7x
topology: tpu7x:2x2x1
jax: 0.10.0
libtpu: 0.0.40
codegen_flags: <defaults>
</compile_context>

<pallas_src>
import functools

import jax
import jax.numpy as jnp
from jax import lax
from jax.experimental import pallas as pl
from jax.experimental.pallas import tpu as pltpu

_LANE = 128


def _res_block_kernel(B, Cin, Cout, W, HWp, PADL, has_ds, cdt,
                      x_ref, m_ref, w1_ref, b1_ref, w2_ref, b2_ref, o_ref):
    """Fused conv1+bn1+relu -> conv2+bn2 (+ fused 1x1 downsample) -> add -> relu.

    Layout: activations are (channels, flat H*W) with the flattened spatial
    grid on the 128-wide lane axis.  A 3x3 conv is ONE MXU matmul
    (Cout, 9*C) @ (9*C, B*HWp): the 9 taps are lane-shifted, per-tap-masked
    copies of the input stacked along the contraction (K) dimension, which
    fills the MXU contraction depth and removes all per-tap VPU accumulates.
    The per-tap masks implement the conv's zero "same"-padding, so no padded
    copy of the activation is ever built.
    """
    masks = m_ref[...]                                     # (9, HWp) f32

    def tap_stack(src, C):
        # src: (C, HWp) f32 activation on the flat (unpadded) H*W grid.
        # Returns (9*C, HWp), tap-major / channel-minor (matches the weights).
        zpad = jnp.zeros((C, PADL), jnp.float32)
        ext = jnp.concatenate([zpad, src, zpad], axis=1)   # halo keeps slices in range
        parts = []
        for kh in range(3):
            for kw in range(3):
                d = (kh - 1) * W + (kw - 1)                # flat-index tap offset
                tap = ext[:, PADL + d:PADL + d + HWp]
                parts.append(tap * masks[kh * 3 + kw:kh * 3 + kw + 1, :])
        return jnp.concatenate(parts, axis=0)

    # Per-sample inputs in f32 (elementwise math stays f32 for v5e's VPU).
    xs = [x_ref[b].astype(jnp.float32) for b in range(B)]

    # ---- conv1 (+ folded bn1 scale) -> +bias -> relu : one matmul ----------
    stack1 = jnp.concatenate([tap_stack(xb, Cin) for xb in xs], axis=1)
    acc1 = jnp.dot(w1_ref[...], stack1.astype(cdt),
                   preferred_element_type=jnp.float32)     # (Cout, B*HWp)
    y1 = jnp.maximum(acc1 + b1_ref[...], 0.0)

    # ---- conv2 (+ folded bn2 scale) and fused 1x1-downsample : one matmul --
    pieces = []
    for b in range(B):
        st = tap_stack(y1[:, b * HWp:(b + 1) * HWp], Cout)
        if has_ds:
            st = jnp.concatenate([st, xs[b]], axis=0)      # 1x1-conv rows
        pieces.append(st)
    stack2 = jnp.concatenate(pieces, axis=1)               # (K2, B*HWp)
    acc2 = jnp.dot(w2_ref[...], stack2.astype(cdt),
                   preferred_element_type=jnp.float32)     # (Cout, B*HWp)
    out = acc2 + b2_ref[...]
    if not has_ds:
        out = out + jnp.concatenate(xs, axis=1)            # identity shortcut
    out = jnp.maximum(out, 0.0)

    # Center-tap mask == valid-pixel mask: zeroes the lane-pad tail so the
    # raw kernel output never contains garbage.
    valid = masks[4:5, :]
    for b in range(B):
        o_ref[b] = (out[:, b * HWp:(b + 1) * HWp] * valid).astype(o_ref.dtype)


def _fold_bn(bn, eps):
    gamma, beta, mean, var = bn
    s = gamma / jnp.sqrt(var + eps)
    return s.reshape(-1, 1), (beta - mean * s).reshape(-1, 1)


def _pick_block_batch(n, cap=8):
    # Largest divisor of n (<= cap) that keeps the grid length >= 2 so the
    # batch axis can still be split across v7x's two TensorCores.
    best = 1
    for b in range(2, min(n, cap) + 1):
        if n % b == 0 and n // b >= 2:
            best = b
    return best


@functools.partial(jax.jit,
                   static_argnames=("stride", "eps", "compute_dtype", "block_batch"))
def basic_res_block(x, params, stride=1, eps=1e-5,
                    compute_dtype=jnp.bfloat16, block_batch=None):
    """BasicResBlock forward.  x: (N, Cin, H, W) NCHW, like PyTorch.

    params: {"w1": (Cout,Cin,3,3), "w2": (Cout,Cout,3,3),
             "bn1"/"bn2": (gamma, beta, running_mean, running_var),
             optional "wd": (Cout,Cin,1,1), "bnd": (...)} for the downsample.
    """
    if stride != 1:
        # TODO(synk): strided conv1 / strided 1x1 downsample not implemented.
        raise NotImplementedError("stride != 1 not supported by this kernel")

    N, Cin, H, W = x.shape
    Cout = params["w1"].shape[0]
    has_ds = (Cin != Cout) or (stride != 1)

    HW = H * W
    HWp = pl.cdiv(HW, _LANE) * _LANE          # lane-aligned flat spatial width
    PADL = pl.cdiv(W + 1, _LANE) * _LANE      # 128-aligned in-kernel halo
    B = block_batch if block_batch is not None else _pick_block_batch(N)
    assert N % B == 0, "block_batch must divide the batch size"

    # Free (N, Cin, H*W) view of x; the only wrapper-side HBM pass is the
    # optional dtype cast (none if the caller already supplies compute_dtype
    # activations, as a real bf16 pipeline would).
    xf = x.reshape(N, Cin, HW).astype(compute_dtype)
    if HWp != HW:                             # rare: H*W not a multiple of 128
        xf = jnp.pad(xf, ((0, 0), (0, 0), (0, HWp - HW)))

    # Per-tap validity masks over the flat H*W grid: implement the conv's
    # zero "same"-padding without materialising a padded activation.
    idx = jnp.arange(HW)
    ii, jj = idx // W, idx % W
    rows = []
    for kh in range(3):
        for kw in range(3):
            ok = ((ii + kh - 1 >= 0) & (ii + kh - 1 < H) &
                  (jj + kw - 1 >= 0) & (jj + kw - 1 < W))
            rows.append(ok)
    masks = jnp.stack(rows).astype(jnp.float32)           # (9, HW)
    if HWp != HW:
        masks = jnp.pad(masks, ((0, 0), (0, HWp - HW)))

    # Fold inference-mode BN into per-out-channel scale/bias; fold the scale
    # straight into the conv weights so the kernel only adds a bias.
    s1, b1 = _fold_bn(params["bn1"], eps)
    s2, b2 = _fold_bn(params["bn2"], eps)
    w1s = jnp.transpose(params["w1"], (0, 2, 3, 1)).reshape(Cout, 9 * Cin)
    w2s = jnp.transpose(params["w2"], (0, 2, 3, 1)).reshape(Cout, 9 * Cout)
    w1_eff = (s1 * w1s).astype(compute_dtype)             # (Cout, 9*Cin)
    w2_eff = s2 * w2s
    b2_eff = b2
    if has_ds:
        sd, bd = _fold_bn(params["bnd"], eps)
        wd = params["wd"].reshape(Cout, Cin)
        w2_eff = jnp.concatenate([w2_eff, sd * wd], axis=1)   # fuse 1x1 downsample
        b2_eff = b2 + bd
    w2_eff = w2_eff.astype(compute_dtype)
    K1, K2 = w1_eff.shape[1], w2_eff.shape[1]

    # VMEM budget derived from actual block bytes (double-buffered I/O blocks
    # + resident constants + in-kernel working set), capped well under v7x's
    # 64 MiB per-TensorCore VMEM; v5e/v6e (128 MiB) have ample headroom.
    cbytes = jnp.finfo(compute_dtype).bits // 8
    io_bytes = 2 * (B * Cin * HWp * cbytes + B * Cout * HWp * 4)
    const_bytes = Cout * (K1 + K2) * cbytes + 9 * HWp * 4 + 2 * Cout * 4
    work_bytes = (K1 + K2 + 6 * Cout + 2 * Cin) * B * HWp * 4
    vmem_limit = int(max(16 << 20,
                         min(56 << 20,
                             2 * (io_bytes + const_bytes) + work_bytes + (4 << 20))))

    kernel = functools.partial(_res_block_kernel, B, Cin, Cout, W, HWp, PADL,
                               has_ds, compute_dtype)
    out_flat = pl.pallas_call(
        kernel,
        out_shape=jax.ShapeDtypeStruct((N, Cout, HWp), jnp.float32),
        grid=(N // B,),                                   # pipelined over batch blocks
        in_specs=[
            pl.BlockSpec((B, Cin, HWp), lambda n: (n, 0, 0)),    # per-block x
            pl.BlockSpec((9, HWp), lambda n: (0, 0)),            # tap masks
            pl.BlockSpec((Cout, K1), lambda n: (0, 0)),          # conv1 weights (bf16)
            pl.BlockSpec((Cout, 1), lambda n: (0, 0)),           # bn1 bias (f32)
            pl.BlockSpec((Cout, K2), lambda n: (0, 0)),          # conv2 (+ds) weights
            pl.BlockSpec((Cout, 1), lambda n: (0, 0)),           # bn2 (+bnd) bias
        ],
        out_specs=pl.BlockSpec((B, Cout, HWp), lambda n: (n, 0, 0)),
        compiler_params=pltpu.CompilerParams(
            dimension_semantics=("parallel",),            # megacore / v7x 2-TC split
            vmem_limit_bytes=vmem_limit,
        ),
    )(xf, masks, w1_eff, b1, w2_eff, b2_eff)

    out = out_flat if HWp == HW else out_flat[:, :, :HW]
    return out.reshape(N, Cout, H, W)                     # pure view when HW % 128 == 0


def basic_res_block_ref(x, params, stride=1, eps=1e-5, compute_dtype=jnp.float32):
    """Pure-JAX reference.  With compute_dtype=float32 it is the exact module
    semantics; with compute_dtype=bfloat16 it mirrors the kernel's operand
    quantisation (BN scale folded into bf16 weights, bf16 activations, f32
    accumulation), so kernel-vs-ref agreement is ~1e-4 and structural bugs
    (tap offsets, masking) are caught with a tight tolerance."""
    assert stride == 1
    N, Cin, H, W = x.shape
    Cout = params["w1"].shape[0]
    has_ds = (Cin != Cout) or (stride != 1)
    hp = lax.Precision.HIGHEST

    def fold(p):
        g, b, m, v = p
        s = g / jnp.sqrt(v + eps)
        return s, b - m * s

    def conv3x3(inp, w):                                  # stride 1, padding 1
        xp = jnp.pad(inp, ((0, 0), (0, 0), (1, 1), (1, 1)))
        out = jnp.zeros((N, w.shape[0], H, W), jnp.float32)
        for kh in range(3):
            for kw in range(3):
                out = out + jnp.einsum(
                    "nchw,oc->nohw", xp[:, :, kh:kh + H, kw:kw + W],
                    w[:, :, kh, kw], precision=hp,
                    preferred_element_type=jnp.float32)
        return out

    s1, b1 = fold(params["bn1"])
    s2, b2 = fold(params["bn2"])
    xc = x.astype(compute_dtype)
    w1 = (params["w1"] * s1[:, None, None, None]).astype(compute_dtype)
    w2 = (params["w2"] * s2[:, None, None, None]).astype(compute_dtype)

    y1 = jax.nn.relu(conv3x3(xc, w1) + b1[None, :, None, None])
    out = conv3x3(y1.astype(compute_dtype), w2) + b2[None, :, None, None]
    if has_ds:
        sd, bd = fold(params["bnd"])
        wd = (params["wd"][:, :, 0, 0] * sd[:, None]).astype(compute_dtype)
        out = out + jnp.einsum("nchw,oc->nohw", xc, wd, precision=hp,
                               preferred_element_type=jnp.float32)
        out = out + bd[None, :, None, None]
    else:
        out = out + xc.astype(jnp.float32)
    return jax.nn.relu(out)


if __name__ == "__main__":
    key = jax.random.PRNGKey(0)
    keys = jax.random.split(key, 12)

    def bn_init(k, c):
        k1, k2, k3, k4 = jax.random.split(k, 4)
        gamma = 1.0 + 0.1 * jax.random.normal(k1, (c,), jnp.float32)
        beta = 0.1 * jax.random.normal(k2, (c,), jnp.float32)
        mean = 0.1 * jax.random.normal(k3, (c,), jnp.float32)
        var = 0.5 + jax.random.uniform(k4, (c,), jnp.float32)
        return (gamma, beta, mean, var)

    # ---- Config A: in_channels != out_channels -> downsample branch.  N=4 so
    # the kernel runs 2 samples per grid step over a grid of length 2. --------
    N, Cin, Cout, H, W = 4, 8, 16, 16, 16
    x = jax.random.normal(keys[0], (N, Cin, H, W), jnp.float32)
    params = {
        "w1": 0.1 * jax.random.normal(keys[1], (Cout, Cin, 3, 3), jnp.float32),
        "w2": 0.1 * jax.random.normal(keys[2], (Cout, Cout, 3, 3), jnp.float32),
        "wd": 0.1 * jax.random.normal(keys[3], (Cout, Cin, 1, 1), jnp.float32),
        "bn1": bn_init(keys[4], Cout),
        "bn2": bn_init(keys[5], Cout),
        "bnd": bn_init(keys[6], Cout),
    }
    out = jax.block_until_ready(basic_res_block(x, params))
    assert out.shape == (N, Cout, H, W)

    # Tight check vs. a reference with identical operand quantisation: catches
    # tap-offset / masking / layout bugs (those give O(0.1) errors).
    ref_q = basic_res_block_ref(x, params, compute_dtype=jnp.bfloat16)
    err_q = float(jnp.max(jnp.abs(out - ref_q)))
    assert err_q < 2e-3, f"quantised-ref max|err|={err_q}"

    # Looser check vs. the exact f32 module semantics (bf16 MXU operands).
    ref_f = basic_res_block_ref(x, params)
    err_f = float(jnp.max(jnp.abs(out - ref_f)))
    assert jnp.allclose(out, ref_f, atol=5e-2, rtol=5e-2), f"f32-ref max|err|={err_f}"

    # ---- Config B: in_channels == out_channels -> identity shortcut. --------
    C, N2 = 16, 2
    x2 = jax.random.normal(keys[7], (N2, C, H, W), jnp.float32)
    params2 = {
        "w1": 0.1 * jax.random.normal(keys[8], (C, C, 3, 3), jnp.float32),
        "w2": 0.1 * jax.random.normal(keys[9], (C, C, 3, 3), jnp.float32),
        "bn1": bn_init(keys[10], C),
        "bn2": bn_init(keys[11], C),
    }
    out2 = jax.block_until_ready(basic_res_block(x2, params2))
    assert out2.shape == (N2, C, H, W)
    ref2_q = basic_res_block_ref(x2, params2, compute_dtype=jnp.bfloat16)
    err2_q = float(jnp.max(jnp.abs(out2 - ref2_q)))
    assert err2_q < 2e-3, f"quantised-ref max|err|={err2_q}"
    ref2_f = basic_res_block_ref(x2, params2)
    err2_f = float(jnp.max(jnp.abs(out2 - ref2_f)))
    assert jnp.allclose(out2, ref2_f, atol=5e-2, rtol=5e-2), f"f32-ref max|err|={err2_f}"

    print("KERNEL_OK")
</pallas_src>

<mosaic_0001>
module attributes {stable_mosaic.version = 11 : i64} {
  func.func @_res_block_kernel(%arg0: i32, %arg1: memref<2x8x256xbf16, #tpu.memory_space<vmem>>, %arg2: memref<9x256xf32, #tpu.memory_space<vmem>>, %arg3: memref<16x72xbf16, #tpu.memory_space<vmem>>, %arg4: memref<16x1xf32, #tpu.memory_space<vmem>>, %arg5: memref<16x152xbf16, #tpu.memory_space<vmem>>, %arg6: memref<16x1xf32, #tpu.memory_space<vmem>>, %arg7: memref<2x16x256xf32, #tpu.memory_space<vmem>>) attributes {dimension_semantics = [#tpu.dimension_semantics<parallel>], iteration_bounds = array<i64: 2>, scalar_prefetch = 0 : i64, scratch_operands = 0 : i64, tpu.core_type = #tpu.core_type<tc>, window_params = [{transform_indices = @transform_0, window_bounds = array<i64: 2, 8, 256>}, {pipeline_mode = #tpu.pipeline_mode<synchronous>, transform_indices = @transform_1, window_bounds = array<i64: 9, 256>}, {pipeline_mode = #tpu.pipeline_mode<synchronous>, transform_indices = @transform_2, window_bounds = array<i64: 16, 72>}, {pipeline_mode = #tpu.pipeline_mode<synchronous>, transform_indices = @transform_3, window_bounds = array<i64: 16, 1>}, {pipeline_mode = #tpu.pipeline_mode<synchronous>, transform_indices = @transform_4, window_bounds = array<i64: 16, 152>}, {pipeline_mode = #tpu.pipeline_mode<synchronous>, transform_indices = @transform_5, window_bounds = array<i64: 16, 1>}, {transform_indices = @transform_6, window_bounds = array<i64: 2, 16, 256>}]} {
    %c0 = arith.constant 0 : index
    %c0_0 = arith.constant 0 : index
    %0 = vector.load %arg2[%c0, %c0_0] : memref<9x256xf32, #tpu.memory_space<vmem>>, vector<9x256xf32>
    %c0_1 = arith.constant 0 : index
    %c0_2 = arith.constant 0 : index
    %c0_3 = arith.constant 0 : index
    %1 = vector.load %arg1[%c0_1, %c0_2, %c0_3] : memref<2x8x256xbf16, #tpu.memory_space<vmem>>, vector<1x8x256xbf16>
    %2 = vector.shape_cast %1 : vector<1x8x256xbf16> to vector<8x256xbf16>
    %3 = arith.extf %2 : vector<8x256xbf16> to vector<8x256xf32>
    %c1 = arith.constant 1 : index
    %c0_4 = arith.constant 0 : index
    %c0_5 = arith.constant 0 : index
    %4 = vector.load %arg1[%c1, %c0_4, %c0_5] : memref<2x8x256xbf16, #tpu.memory_space<vmem>>, vector<1x8x256xbf16>
    %5 = vector.shape_cast %4 : vector<1x8x256xbf16> to vector<8x256xbf16>
    %6 = arith.extf %5 : vector<8x256xbf16> to vector<8x256xf32>
    %cst = arith.constant 0.000000e+00 : f32
    %7 = vector.broadcast %cst : f32 to vector<8x128xf32>
    %8 = tpu.concatenate %7, %3, %7 in 1 : vector<8x128xf32>, vector<8x256xf32>, vector<8x128xf32> -> vector<8x512xf32>
    %9 = vector.extract_strided_slice %8 {offsets = [0, 111], sizes = [8, 256], strides = [1, 1]} : vector<8x512xf32> to vector<8x256xf32>
    %10 = vector.extract_strided_slice %0 {offsets = [0, 0], sizes = [1, 256], strides = [1, 1]} : vector<9x256xf32> to vector<1x256xf32>
    %11 = vector.broadcast %10 : vector<1x256xf32> to vector<8x256xf32>
    %12 = arith.mulf %9, %11 : vector<8x256xf32>
    %13 = vector.extract_strided_slice %8 {offsets = [0, 112], sizes = [8, 256], strides = [1, 1]} : vector<8x512xf32> to vector<8x256xf32>
    %14 = vector.extract_strided_slice %0 {offsets = [1, 0], sizes = [1, 256], strides = [1, 1]} : vector<9x256xf32> to vector<1x256xf32>
    %15 = vector.broadcast %14 : vector<1x256xf32> to vector<8x256xf32>
    %16 = arith.mulf %13, %15 : vector<8x256xf32>
    %17 = vector.extract_strided_slice %8 {offsets = [0, 113], sizes = [8, 256], strides = [1, 1]} : vector<8x512xf32> to vector<8x256xf32>
    %18 = vector.extract_strided_slice %0 {offsets = [2, 0], sizes = [1, 256], strides = [1, 1]} : vector<9x256xf32> to vector<1x256xf32>
    %19 = vector.broadcast %18 : vector<1x256xf32> to vector<8x256xf32>
    %20 = arith.mulf %17, %19 : vector<8x256xf32>
    %21 = vector.extract_strided_slice %8 {offsets = [0, 127], sizes = [8, 256], strides = [1, 1]} : vector<8x512xf32> to vector<8x256xf32>
    %22 = vector.extract_strided_slice %0 {offsets = [3, 0], sizes = [1, 256], strides = [1, 1]} : vector<9x256xf32> to vector<1x256xf32>
    %23 = vector.broadcast %22 : vector<1x256xf32> to vector<8x256xf32>
    %24 = arith.mulf %21, %23 : vector<8x256xf32>
    %25 = vector.extract_strided_slice %8 {offsets = [0, 128], sizes = [8, 256], strides = [1, 1]} : vector<8x512xf32> to vector<8x256xf32>
    %26 = vector.extract_strided_slice %0 {offsets = [4, 0], sizes = [1, 256], strides = [1, 1]} : vector<9x256xf32> to vector<1x256xf32>
    %27 = vector.broadcast %26 : vector<1x256xf32> to vector<8x256xf32>
    %28 = arith.mulf %25, %27 : vector<8x256xf32>
    %29 = vector.extract_strided_slice %8 {offsets = [0, 129], sizes = [8, 256], strides = [1, 1]} : vector<8x512xf32> to vector<8x256xf32>
    %30 = vector.extract_strided_slice %0 {offsets = [5, 0], sizes = [1, 256], strides = [1, 1]} : vector<9x256xf32> to vector<1x256xf32>
    %31 = vector.broadcast %30 : vector<1x256xf32> to vector<8x256xf32>
    %32 = arith.mulf %29, %31 : vector<8x256xf32>
    %33 = vector.extract_strided_slice %8 {offsets = [0, 143], sizes = [8, 256], strides = [1, 1]} : vector<8x512xf32> to vector<8x256xf32>
    %34 = vector.extract_strided_slice %0 {offsets = [6, 0], sizes = [1, 256], strides = [1, 1]} : vector<9x256xf32> to vector<1x256xf32>
    %35 = vector.broadcast %34 : vector<1x256xf32> to vector<8x256xf32>
    %36 = arith.mulf %33, %35 : vector<8x256xf32>
    %37 = vector.extract_strided_slice %8 {offsets = [0, 144], sizes = [8, 256], strides = [1, 1]} : vector<8x512xf32> to vector<8x256xf32>
    %38 = vector.extract_strided_slice %0 {offsets = [7, 0], sizes = [1, 256], strides = [1, 1]} : vector<9x256xf32> to vector<1x256xf32>
    %39 = vector.broadcast %38 : vector<1x256xf32> to vector<8x256xf32>
    %40 = arith.mulf %37, %39 : vector<8x256xf32>
    %41 = vector.extract_strided_slice %8 {offsets = [0, 145], sizes = [8, 256], strides = [1, 1]} : vector<8x512xf32> to vector<8x256xf32>
    %42 = vector.extract_strided_slice %0 {offsets = [8, 0], sizes = [1, 256], strides = [1, 1]} : vector<9x256xf32> to vector<1x256xf32>
    %43 = vector.broadcast %42 : vector<1x256xf32> to vector<8x256xf32>
    %44 = arith.mulf %41, %43 : vector<8x256xf32>
    %45 = tpu.concatenate %12, %16, %20, %24, %28, %32, %36, %40, %44 in 0 : vector<8x256xf32>, vector<8x256xf32>, vector<8x256xf32>, vector<8x256xf32>, vector<8x256xf32>, vector<8x256xf32>, vector<8x256xf32>, vector<8x256xf32>, vector<8x256xf32> -> vector<72x256xf32>
    %cst_6 = arith.constant 0.000000e+00 : f32
    %46 = vector.broadcast %cst_6 : f32 to vector<8x128xf32>
    %47 = tpu.concatenate %46, %6, %46 in 1 : vector<8x128xf32>, vector<8x256xf32>, vector<8x128xf32> -> vector<8x512xf32>
    %48 = vector.extract_strided_slice %47 {offsets = [0, 111], sizes = [8, 256], strides = [1, 1]} : vector<8x512xf32> to vector<8x256xf32>
    %49 = vector.extract_strided_slice %0 {offsets = [0, 0], sizes = [1, 256], strides = [1, 1]} : vector<9x256xf32> to vector<1x256xf32>
    %50 = vector.broadcast %49 : vector<1x256xf32> to vector<8x256xf32>
    %51 = arith.mulf %48, %50 : vector<8x256xf32>
    %52 = vector.extract_strided_slice %47 {offsets = [0, 112], sizes = [8, 256], strides = [1, 1]} : vector<8x512xf32> to vector<8x256xf32>
    %53 = vector.extract_strided_slice %0 {offsets = [1, 0], sizes = [1, 256], strides = [1, 1]} : vector<9x256xf32> to vector<1x256xf32>
    %54 = vector.broadcast %53 : vector<1x256xf32> to vector<8x256xf32>
    %55 = arith.mulf %52, %54 : vector<8x256xf32>
    %56 = vector.extract_strided_slice %47 {offsets = [0, 113], sizes = [8, 256], strides = [1, 1]} : vector<8x512xf32> to vector<8x256xf32>
    %57 = vector.extract_strided_slice %0 {offsets = [2, 0], sizes = [1, 256], strides = [1, 1]} : vector<9x256xf32> to vector<1x256xf32>
    %58 = vector.broadcast %57 : vector<1x256xf32> to vector<8x256xf32>
    %59 = arith.mulf %56, %58 : vector<8x256xf32>
    %60 = vector.extract_strided_slice %47 {offsets = [0, 127], sizes = [8, 256], strides = [1, 1]} : vector<8x512xf32> to vector<8x256xf32>
    %61 = vector.extract_strided_slice %0 {offsets = [3, 0], sizes = [1, 256], strides = [1, 1]} : vector<9x256xf32> to vector<1x256xf32>
    %62 = vector.broadcast %61 : vector<1x256xf32> to vector<8x256xf32>
    %63 = arith.mulf %60, %62 : vector<8x256xf32>
    %64 = vector.extract_strided_slice %47 {offsets = [0, 128], sizes = [8, 256], strides = [1, 1]} : vector<8x512xf32> to vector<8x256xf32>
    %65 = vector.extract_strided_slice %0 {offsets = [4, 0], sizes = [1, 256], strides = [1, 1]} : vector<9x256xf32> to vector<1x256xf32>
    %66 = vector.broadcast %65 : vector<1x256xf32> to vector<8x256xf32>
    %67 = arith.mulf %64, %66 : vector<8x256xf32>
    %68 = vector.extract_strided_slice %47 {offsets = [0, 129], sizes = [8, 256], strides = [1, 1]} : vector<8x512xf32> to vector<8x256xf32>
    %69 = vector.extract_strided_slice %0 {offsets = [5, 0], sizes = [1, 256], strides = [1, 1]} : vector<9x256xf32> to vector<1x256xf32>
    %70 = vector.broadcast %69 : vector<1x256xf32> to vector<8x256xf32>
    %71 = arith.mulf %68, %70 : vector<8x256xf32>
    %72 = vector.extract_strided_slice %47 {offsets = [0, 143], sizes = [8, 256], strides = [1, 1]} : vector<8x512xf32> to vector<8x256xf32>
    %73 = vector.extract_strided_slice %0 {offsets = [6, 0], sizes = [1, 256], strides = [1, 1]} : vector<9x256xf32> to vector<1x256xf32>
    %74 = vector.broadcast %73 : vector<1x256xf32> to vector<8x256xf32>
    %75 = arith.mulf %72, %74 : vector<8x256xf32>
    %76 = vector.extract_strided_slice %47 {offsets = [0, 144], sizes = [8, 256], strides = [1, 1]} : vector<8x512xf32> to vector<8x256xf32>
    %77 = vector.extract_strided_slice %0 {offsets = [7, 0], sizes = [1, 256], strides = [1, 1]} : vector<9x256xf32> to vector<1x256xf32>
    %78 = vector.broadcast %77 : vector<1x256xf32> to vector<8x256xf32>
    %79 = arith.mulf %76, %78 : vector<8x256xf32>
    %80 = vector.extract_strided_slice %47 {offsets = [0, 145], sizes = [8, 256], strides = [1, 1]} : vector<8x512xf32> to vector<8x256xf32>
    %81 = vector.extract_strided_slice %0 {offsets = [8, 0], sizes = [1, 256], strides = [1, 1]} : vector<9x256xf32> to vector<1x256xf32>
    %82 = vector.broadcast %81 : vector<1x256xf32> to vector<8x256xf32>
    %83 = arith.mulf %80, %82 : vector<8x256xf32>
    %84 = tpu.concatenate %51, %55, %59, %63, %67, %71, %75, %79, %83 in 0 : vector<8x256xf32>, vector<8x256xf32>, vector<8x256xf32>, vector<8x256xf32>, vector<8x256xf32>, vector<8x256xf32>, vector<8x256xf32>, vector<8x256xf32>, vector<8x256xf32> -> vector<72x256xf32>
    %85 = tpu.concatenate %45, %84 in 1 : vector<72x256xf32>, vector<72x256xf32> -> vector<72x512xf32>
    %c0_7 = arith.constant 0 : index
    %c0_8 = arith.constant 0 : index
    %86 = vector.load %arg3[%c0_7, %c0_8] : memref<16x72xbf16, #tpu.memory_space<vmem>>, vector<16x72xbf16>
    %87 = arith.truncf %85 : vector<72x512xf32> to vector<72x512xbf16>
    %cst_9 = arith.constant dense<0.000000e+00> : vector<16x512xf32>
    %88 = tpu.matmul %86, %87, %cst_9 {dimension_numbers = #tpu.dot_dimension_numbers<[1], [0], [0], [1], [0, 0, 1, 1], [], []>} : vector<16x72xbf16>, vector<72x512xbf16>, vector<16x512xf32> -> vector<16x512xf32>
    %c0_10 = arith.constant 0 : index
    %c0_11 = arith.constant 0 : index
    %89 = vector.load %arg4[%c0_10, %c0_11] : memref<16x1xf32, #tpu.memory_space<vmem>>, vector<16x1xf32>
    %90 = vector.broadcast %89 : vector<16x1xf32> to vector<16x512xf32>
    %91 = arith.addf %88, %90 : vector<16x512xf32>
    %cst_12 = arith.constant 0.000000e+00 : f32
    %92 = vector.broadcast %cst_12 : f32 to vector<16x512xf32>
    %93 = arith.maximumf %91, %92 : vector<16x512xf32>
    %94 = vector.extract_strided_slice %93 {offsets = [0, 0], sizes = [16, 256], strides = [1, 1]} : vector<16x512xf32> to vector<16x256xf32>
    %cst_13 = arith.constant 0.000000e+00 : f32
    %95 = vector.broadcast %cst_13 : f32 to vector<16x128xf32>
    %96 = tpu.concatenate %95, %94, %95 in 1 : vector<16x128xf32>, vector<16x256xf32>, vector<16x128xf32> -> vector<16x512xf32>
    %97 = vector.extract_strided_slice %96 {offsets = [0, 111], sizes = [16, 256], strides = [1, 1]} : vector<16x512xf32> to vector<16x256xf32>
    %98 = vector.extract_strided_slice %0 {offsets = [0, 0], sizes = [1, 256], strides = [1, 1]} : vector<9x256xf32> to vector<1x256xf32>
    %99 = vector.broadcast %98 : vector<1x256xf32> to vector<16x256xf32>
    %100 = arith.mulf %97, %99 : vector<16x256xf32>
    %101 = vector.extract_strided_slice %96 {offsets = [0, 112], sizes = [16, 256], strides = [1, 1]} : vector<16x512xf32> to vector<16x256xf32>
    %102 = vector.extract_strided_slice %0 {offsets = [1, 0], sizes = [1, 256], strides = [1, 1]} : vector<9x256xf32> to vector<1x256xf32>
    %103 = vector.broadcast %102 : vector<1x256xf32> to vector<16x256xf32>
    %104 = arith.mulf %101, %103 : vector<16x256xf32>
    %105 = vector.extract_strided_slice %96 {offsets = [0, 113], sizes = [16, 256], strides = [1, 1]} : vector<16x512xf32> to vector<16x256xf32>
    %106 = vector.extract_strided_slice %0 {offsets = [2, 0], sizes = [1, 256], strides = [1, 1]} : vector<9x256xf32> to vector<1x256xf32>
    %107 = vector.broadcast %106 : vector<1x256xf32> to vector<16x256xf32>
    %108 = arith.mulf %105, %107 : vector<16x256xf32>
    %109 = vector.extract_strided_slice %96 {offsets = [0, 127], sizes = [16, 256], strides = [1, 1]} : vector<16x512xf32> to vector<16x256xf32>
    %110 = vector.extract_strided_slice %0 {offsets = [3, 0], sizes = [1, 256], strides = [1, 1]} : vector<9x256xf32> to vector<1x256xf32>
    %111 = vector.broadcast %110 : vector<1x256xf32> to vector<16x256xf32>
    %112 = arith.mulf %109, %111 : vector<16x256xf32>
    %113 = vector.extract_strided_slice %96 {offsets = [0, 128], sizes = [16, 256], strides = [1, 1]} : vector<16x512xf32> to vector<16x256xf32>
    %114 = vector.extract_strided_slice %0 {offsets = [4, 0], sizes = [1, 256], strides = [1, 1]} : vector<9x256xf32> to vector<1x256xf32>
    %115 = vector.broadcast %114 : vector<1x256xf32> to vector<16x256xf32>
    %116 = arith.mulf %113, %115 : vector<16x256xf32>
    %117 = vector.extract_strided_slice %96 {offsets = [0, 129], sizes = [16, 256], strides = [1, 1]} : vector<16x512xf32> to vector<16x256xf32>
    %118 = vector.extract_strided_slice %0 {offsets = [5, 0], sizes = [1, 256], strides = [1, 1]} : vector<9x256xf32> to vector<1x256xf32>
    %119 = vector.broadcast %118 : vector<1x256xf32> to vector<16x256xf32>
    %120 = arith.mulf %117, %119 : vector<16x256xf32>
    %121 = vector.extract_strided_slice %96 {offsets = [0, 143], sizes = [16, 256], strides = [1, 1]} : vector<16x512xf32> to vector<16x256xf32>
    %122 = vector.extract_strided_slice %0 {offsets = [6, 0], sizes = [1, 256], strides = [1, 1]} : vector<9x256xf32> to vector<1x256xf32>
    %123 = vector.broadcast %122 : vector<1x256xf32> to vector<16x256xf32>
    %124 = arith.mulf %121, %123 : vector<16x256xf32>
    %125 = vector.extract_strided_slice %96 {offsets = [0, 144], sizes = [16, 256], strides = [1, 1]} : vector<16x512xf32> to vector<16x256xf32>
    %126 = vector.extract_strided_slice %0 {offsets = [7, 0], sizes = [1, 256], strides = [1, 1]} : vector<9x256xf32> to vector<1x256xf32>
    %127 = vector.broadcast %126 : vector<1x256xf32> to vector<16x256xf32>
    %128 = arith.mulf %125, %127 : vector<16x256xf32>
    %129 = vector.extract_strided_slice %96 {offsets = [0, 145], sizes = [16, 256], strides = [1, 1]} : vector<16x512xf32> to vector<16x256xf32>
    %130 = vector.extract_strided_slice %0 {offsets = [8, 0], sizes = [1, 256], strides = [1, 1]} : vector<9x256xf32> to vector<1x256xf32>
    %131 = vector.broadcast %130 : vector<1x256xf32> to vector<16x256xf32>
    %132 = arith.mulf %129, %131 : vector<16x256xf32>
    %133 = tpu.concatenate %100, %104, %108, %112, %116, %120, %124, %128, %132 in 0 : vector<16x256xf32>, vector<16x256xf32>, vector<16x256xf32>, vector<16x256xf32>, vector<16x256xf32>, vector<16x256xf32>, vector<16x256xf32>, vector<16x256xf32>, vector<16x256xf32> -> vector<144x256xf32>
    %134 = tpu.concatenate %133, %3 in 0 : vector<144x256xf32>, vector<8x256xf32> -> vector<152x256xf32>
    %135 = vector.extract_strided_slice %93 {offsets = [0, 256], sizes = [16, 256], strides = [1, 1]} : vector<16x512xf32> to vector<16x256xf32>
    %cst_14 = arith.constant 0.000000e+00 : f32
    %136 = vector.broadcast %cst_14 : f32 to vector<16x128xf32>
    %137 = tpu.concatenate %136, %135, %136 in 1 : vector<16x128xf32>, vector<16x256xf32>, vector<16x128xf32> -> vector<16x512xf32>
    %138 = vector.extract_strided_slice %137 {offsets = [0, 111], sizes = [16, 256], strides = [1, 1]} : vector<16x512xf32> to vector<16x256xf32>
    %139 = vector.extract_strided_slice %0 {offsets = [0, 0], sizes = [1, 256], strides = [1, 1]} : vector<9x256xf32> to vector<1x256xf32>
    %140 = vector.broadcast %139 : vector<1x256xf32> to vector<16x256xf32>
    %141 = arith.mulf %138, %140 : vector<16x256xf32>
    %142 = vector.extract_strided_slice %137 {offsets = [0, 112], sizes = [16, 256], strides = [1, 1]} : vector<16x512xf32> to vector<16x256xf32>
    %143 = vector.extract_strided_slice %0 {offsets = [1, 0], sizes = [1, 256], strides = [1, 1]} : vector<9x256xf32> to vector<1x256xf32>
    %144 = vector.broadcast %143 : vector<1x256xf32> to vector<16x256xf32>
    %145 = arith.mulf %142, %144 : vector<16x256xf32>
    %146 = vector.extract_strided_slice %137 {offsets = [0, 113], sizes = [16, 256], strides = [1, 1]} : vector<16x512xf32> to vector<16x256xf32>
    %147 = vector.extract_strided_slice %0 {offsets = [2, 0], sizes = [1, 256], strides = [1, 1]} : vector<9x256xf32> to vector<1x256xf32>
    %148 = vector.broadcast %147 : vector<1x256xf32> to vector<16x256xf32>
    %149 = arith.mulf %146, %148 : vector<16x256xf32>
    %150 = vector.extract_strided_slice %137 {offsets = [0, 127], sizes = [16, 256], strides = [1, 1]} : vector<16x512xf32> to vector<16x256xf32>
    %151 = vector.extract_strided_slice %0 {offsets = [3, 0], sizes = [1, 256], strides = [1, 1]} : vector<9x256xf32> to vector<1x256xf32>
    %152 = vector.broadcast %151 : vector<1x256xf32> to vector<16x256xf32>
    %153 = arith.mulf %150, %152 : vector<16x256xf32>
    %154 = vector.extract_strided_slice %137 {offsets = [0, 128], sizes = [16, 256], strides = [1, 1]} : vector<16x512xf32> to vector<16x256xf32>
    %155 = vector.extract_strided_slice %0 {offsets = [4, 0], sizes = [1, 256], strides = [1, 1]} : vector<9x256xf32> to vector<1x256xf32>
    %156 = vector.broadcast %155 : vector<1x256xf32> to vector<16x256xf32>
    %157 = arith.mulf %154, %156 : vector<16x256xf32>
    %158 = vector.extract_strided_slice %137 {offsets = [0, 129], sizes = [16, 256], strides = [1, 1]} : vector<16x512xf32> to vector<16x256xf32>
    %159 = vector.extract_strided_slice %0 {offsets = [5, 0], sizes = [1, 256], strides = [1, 1]} : vector<9x256xf32> to vector<1x256xf32>
    %160 = vector.broadcast %159 : vector<1x256xf32> to vector<16x256xf32>
    %161 = arith.mulf %158, %160 : vector<16x256xf32>
    %162 = vector.extract_strided_slice %137 {offsets = [0, 143], sizes = [16, 256], strides = [1, 1]} : vector<16x512xf32> to vector<16x256xf32>
    %163 = vector.extract_strided_slice %0 {offsets = [6, 0], sizes = [1, 256], strides = [1, 1]} : vector<9x256xf32> to vector<1x256xf32>
    %164 = vector.broadcast %163 : vector<1x256xf32> to vector<16x256xf32>
    %165 = arith.mulf %162, %164 : vector<16x256xf32>
    %166 = vector.extract_strided_slice %137 {offsets = [0, 144], sizes = [16, 256], strides = [1, 1]} : vector<16x512xf32> to vector<16x256xf32>
    %167 = vector.extract_strided_slice %0 {offsets = [7, 0], sizes = [1, 256], strides = [1, 1]} : vector<9x256xf32> to vector<1x256xf32>
    %168 = vector.broadcast %167 : vector<1x256xf32> to vector<16x256xf32>
    %169 = arith.mulf %166, %168 : vector<16x256xf32>
    %170 = vector.extract_strided_slice %137 {offsets = [0, 145], sizes = [16, 256], strides = [1, 1]} : vector<16x512xf32> to vector<16x256xf32>
    %171 = vector.extract_strided_slice %0 {offsets = [8, 0], sizes = [1, 256], strides = [1, 1]} : vector<9x256xf32> to vector<1x256xf32>
    %172 = vector.broadcast %171 : vector<1x256xf32> to vector<16x256xf32>
    %173 = arith.mulf %170, %172 : vector<16x256xf32>
    %174 = tpu.concatenate %141, %145, %149, %153, %157, %161, %165, %169, %173 in 0 : vector<16x256xf32>, vector<16x256xf32>, vector<16x256xf32>, vector<16x256xf32>, vector<16x256xf32>, vector<16x256xf32>, vector<16x256xf32>, vector<16x256xf32>, vector<16x256xf32> -> vector<144x256xf32>
    %175 = tpu.concatenate %174, %6 in 0 : vector<144x256xf32>, vector<8x256xf32> -> vector<152x256xf32>
    %176 = tpu.concatenate %134, %175 in 1 : vector<152x256xf32>, vector<152x256xf32> -> vector<152x512xf32>
    %c0_15 = arith.constant 0 : index
    %c0_16 = arith.constant 0 : index
    %177 = vector.load %arg5[%c0_15, %c0_16] : memref<16x152xbf16, #tpu.memory_space<vmem>>, vector<16x152xbf16>
    %178 = arith.truncf %176 : vector<152x512xf32> to vector<152x512xbf16>
    %cst_17 = arith.constant dense<0.000000e+00> : vector<16x512xf32>
    %179 = tpu.matmul %177, %178, %cst_17 {dimension_numbers = #tpu.dot_dimension_numbers<[1], [0], [0], [1], [0, 0, 1, 1], [], []>} : vector<16x152xbf16>, vector<152x512xbf16>, vector<16x512xf32> -> vector<16x512xf32>
    %c0_18 = arith.constant 0 : index
    %c0_19 = arith.constant 0 : index
    %180 = vector.load %arg6[%c0_18, %c0_19] : memref<16x1xf32, #tpu.memory_space<vmem>>, vector<16x1xf32>
    %181 = vector.broadcast %180 : vector<16x1xf32> to vector<16x512xf32>
    %182 = arith.addf %179, %181 : vector<16x512xf32>
    %cst_20 = arith.constant 0.000000e+00 : f32
    %183 = vector.broadcast %cst_20 : f32 to vector<16x512xf32>
    %184 = arith.maximumf %182, %183 : vector<16x512xf32>
    %185 = vector.extract_strided_slice %0 {offsets = [4, 0], sizes = [1, 256], strides = [1, 1]} : vector<9x256xf32> to vector<1x256xf32>
    %186 = vector.extract_strided_slice %184 {offsets = [0, 0], sizes = [16, 256], strides = [1, 1]} : vector<16x512xf32> to vector<16x256xf32>
    %187 = vector.broadcast %185 : vector<1x256xf32> to vector<16x256xf32>
    %188 = arith.mulf %186, %187 : vector<16x256xf32>
    %c0_21 = arith.constant 0 : index
    %c0_22 = arith.constant 0 : index
    %c0_23 = arith.constant 0 : index
    %189 = vector.load %arg7[%c0_21, %c0_22, %c0_23] : memref<2x16x256xf32, #tpu.memory_space<vmem>>, vector<1x16x256xf32>
    %190 = vector.shape_cast %189 : vector<1x16x256xf32> to vector<16x256xf32>
    %191 = vector.shape_cast %188 : vector<16x256xf32> to vector<1x16x256xf32>
    tpu.vector_store %arg7[%c0_21, %c0_22, %c0_23], %191 {strides = array<i32>} : memref<2x16x256xf32, #tpu.memory_space<vmem>>, vector<1x16x256xf32>,
    %192 = vector.extract_strided_slice %184 {offsets = [0, 256], sizes = [16, 256], strides = [1, 1]} : vector<16x512xf32> to vector<16x256xf32>
    %193 = vector.broadcast %185 : vector<1x256xf32> to vector<16x256xf32>
    %194 = arith.mulf %192, %193 : vector<16x256xf32>
    %c1_24 = arith.constant 1 : index
    %c0_25 = arith.constant 0 : index
    %c0_26 = arith.constant 0 : index
    %195 = vector.load %arg7[%c1_24, %c0_25, %c0_26] : memref<2x16x256xf32, #tpu.memory_space<vmem>>, vector<1x16x256xf32>
    %196 = vector.shape_cast %195 : vector<1x16x256xf32> to vector<16x256xf32>
    %197 = vector.shape_cast %194 : vector<16x256xf32> to vector<1x16x256xf32>
    tpu.vector_store %arg7[%c1_24, %c0_25, %c0_26], %197 {strides = array<i32>} : memref<2x16x256xf32, #tpu.memory_space<vmem>>, vector<1x16x256xf32>,
    return
  }
  func.func @transform_0(%arg0: i32) -> (i32, i32, i32) {
    %c0_i32 = arith.constant 0 : i32
    %c0_i32_0 = arith.constant 0 : i32
    %c0_i32_1 = arith.constant 0 : i32
    return %arg0, %c0_i32, %c0_i32_0 : i32, i32, i32
  }
  func.func @transform_1(%arg0: i32) -> (i32, i32) {
    %c0_i32 = arith.constant 0 : i32
    %c0_i32_0 = arith.constant 0 : i32
    %c0_i32_1 = arith.constant 0 : i32
    return %c0_i32, %c0_i32_0 : i32, i32
  }
  func.func @transform_2(%arg0: i32) -> (i32, i32) {
    %c0_i32 = arith.constant 0 : i32
    %c0_i32_0 = arith.constant 0 : i32
    %c0_i32_1 = arith.constant 0 : i32
    return %c0_i32, %c0_i32_0 : i32, i32
  }
  func.func @transform_3(%arg0: i32) -> (i32, i32) {
    %c0_i32 = arith.constant 0 : i32
    %c0_i32_0 = arith.constant 0 : i32
    %c0_i32_1 = arith.constant 0 : i32
    return %c0_i32, %c0_i32_0 : i32, i32
  }
  func.func @transform_4(%arg0: i32) -> (i32, i32) {
    %c0_i32 = arith.constant 0 : i32
    %c0_i32_0 = arith.constant 0 : i32
    %c0_i32_1 = arith.constant 0 : i32
    return %c0_i32, %c0_i32_0 : i32, i32
  }
  func.func @transform_5(%arg0: i32) -> (i32, i32) {
    %c0_i32 = arith.constant 0 : i32
    %c0_i32_0 = arith.constant 0 : i32
    %c0_i32_1 = arith.constant 0 : i32
    return %c0_i32, %c0_i32_0 : i32, i32
  }
  func.func @transform_6(%arg0: i32) -> (i32, i32, i32) {
    %c0_i32 = arith.constant 0 : i32
    %c0_i32_0 = arith.constant 0 : i32
    %c0_i32_1 = arith.constant 0 : i32
    return %arg0, %c0_i32, %c0_i32_0 : i32, i32, i32
  }
}

</mosaic_0001>

<llo_original>
// kernel: basic_res_block.1
$region0: #{basic_res_block.1}
  #allocation0 [shape = 'u32[]', space=smem, size = 0x4, offset = 0x4, fixed_abs, tag = 'smem constant byte address 0x4 - core index']
  #allocation1 [shape = 'u32[144,128]{1,0:T(1,128)}', space=vmem, size = 0x12000, scoped, tag = 'internal scratch']
  %s0 = inlined_call_operand.vmem [shape: bf16[4,8,256], index: 0, kind: input, shape index: {}]
  %s1 = inlined_call_operand.vmem [shape: f32[9,256], index: 1, kind: input, shape index: {}]
  %s2 = inlined_call_operand.vmem [shape: bf16[16,72], index: 2, kind: input, shape index: {}]
  %s3 = inlined_call_operand.vmem [shape: f32[16,1], index: 3, kind: input, shape index: {}]
  %s4 = inlined_call_operand.vmem [shape: bf16[16,152], index: 4, kind: input, shape index: {}]
  %s5 = inlined_call_operand.vmem [shape: f32[16,1], index: 5, kind: input, shape index: {}]
  %s6 = inlined_call_operand.vmem [shape: f32[4,16,256], index: 6, kind: output, shape index: {}]
  %s7 = sld [smem:[#allocation0]]
  $region57: #{basic_res_block.1} parent=0
    _
  %s9 = ssub.s32 1, %s7
  %s10 = scalar_select 0, %s9, %s7
  loop: start=0, step=1, limit=4
  $region2: #{basic_res_block.1} parent=0 // loop_pre_header
    _
  $region3: #{basic_res_block.1} parent=0 // loop_header
    %s12 = sphi 0, %s16
    %p13 = scmp.ge.s32.totalorder %s12, 4
    %s22 = sphi 0, %s24
    %s25 = sphi 0, %s22
    %s26 = sphi 0, %s25
    %s42 = sphi 0, %s26
    %s46 = sphi 0, %s46
    %s48 = sphi 0, %s46
    %s49 = sphi 0, %s48
    %s63 = sphi 0, %s49
    %s67 = sphi 0, %s67
    %s69 = sphi 0, %s67
    %s70 = sphi 0, %s69
    %s84 = sphi 0, %s70
    %s88 = sphi 0, %s88
    %s90 = sphi 0, %s88
    %s91 = sphi 0, %s90
    %s105 = sphi 0, %s91
    %s109 = sphi 0, %s109
    %s111 = sphi 0, %s109
    %s112 = sphi 0, %s111
    %s126 = sphi 0, %s112
    %s130 = sphi 0, %s130
    %s132 = sphi 0, %s130
    %s133 = sphi 0, %s132
    %s147 = sphi 0, %s133
    %s153 = sphi 0, %s155
    %s156 = sphi 0, %s153
    %s157 = sphi 0, %s156
    %s173 = sphi 0, %s157
  $region4: #{basic_res_block.1} parent=0 // loop_header_branch
    %15 = sbr.rel (%p13) target = $region8
  $region5: #{basic_res_block.1} parent=0 // loop_body
    %s17 = ssub.s32 %s12, 1
    %s18 = ssub.s32 %s12, 2
    %s19 = sadd.s32 %s12, 1
    %s20 = ssub.s32 %s12, %s19
    %p21 = scmp.eq.s32.totalorder %s20, 0
    %s23 = sadd.s32 %s22, 1
    %s24 = scalar_select %p21, %s22, %s23
    %p27 = pneg %p21
    %p28 = scmp.eq.s32.totalorder %s12, 1
    %p29 = por %p27, %p28
    %p30 = scmp.ne.s32.totalorder %s22, %s25
    %p31 = scmp.eq.s32.totalorder %s12, 0
    %p32 = por %p30, %p31
    %p33 = scmp.ne.s32.totalorder %s22, %s25
    %p34 = scmp.eq.s32.totalorder %s17, 1
    %p35 = por %p33, %p34
    %p36 = scmp.ne.s32.totalorder %s25, %s26
    %p37 = scmp.eq.s32.totalorder %s17, 0
    %p38 = por %p36, %p37
    %p39 = scmp.ne.s32.totalorder %s25, %s26
    %p40 = scmp.eq.s32.totalorder %s18, 1
    %p41 = por %p39, %p40
    %p43 = scmp.ne.s32.totalorder %s26, %s42
    %p44 = scmp.eq.s32.totalorder %s18, 0
    %p45 = por %p43, %p44
    %s47 = sadd.s32 %s46, 1
    %p50 = scmp.eq.s32.totalorder %s12, 1
    %p51 = scmp.ne.s32.totalorder %s46, %s48
    %p52 = scmp.eq.s32.totalorder %s12, 0
    %p53 = por %p51, %p52
    %p54 = scmp.ne.s32.totalorder %s46, %s48
    %p55 = scmp.eq.s32.totalorder %s17, 1
    %p56 = por %p54, %p55
    %p57 = scmp.ne.s32.totalorder %s48, %s49
    %p58 = scmp.eq.s32.totalorder %s17, 0
    %p59 = por %p57, %p58
    %p60 = scmp.ne.s32.totalorder %s48, %s49
    %p61 = scmp.eq.s32.totalorder %s18, 1
    %p62 = por %p60, %p61
    %p64 = scmp.ne.s32.totalorder %s49, %s63
    %p65 = scmp.eq.s32.totalorder %s18, 0
    %p66 = por %p64, %p65
    %s68 = sadd.s32 %s67, 1
    %p71 = scmp.eq.s32.totalorder %s12, 1
    %p72 = scmp.ne.s32.totalorder %s67, %s69
    %p73 = scmp.eq.s32.totalorder %s12, 0
    %p74 = por %p72, %p73
    %p75 = scmp.ne.s32.totalorder %s67, %s69
    %p76 = scmp.eq.s32.totalorder %s17, 1
    %p77 = por %p75, %p76
    %p78 = scmp.ne.s32.totalorder %s69, %s70
    %p79 = scmp.eq.s32.totalorder %s17, 0
    %p80 = por %p78, %p79
    %p81 = scmp.ne.s32.totalorder %s69, %s70
    %p82 = scmp.eq.s32.totalorder %s18, 1
    %p83 = por %p81, %p82
    %p85 = scmp.ne.s32.totalorder %s70, %s84
    %p86 = scmp.eq.s32.totalorder %s18, 0
    %p87 = por %p85, %p86
    %s89 = sadd.s32 %s88, 1
    %p92 = scmp.eq.s32.totalorder %s12, 1
    %p93 = scmp.ne.s32.totalorder %s88, %s90
    %p94 = scmp.eq.s32.totalorder %s12, 0
    %p95 = por %p93, %p94
    %p96 = scmp.ne.s32.totalorder %s88, %s90
    %p97 = scmp.eq.s32.totalorder %s17, 1
    %p98 = por %p96, %p97
    %p99 = scmp.ne.s32.totalorder %s90, %s91
    %p100 = scmp.eq.s32.totalorder %s17, 0
    %p101 = por %p99, %p100
    %p102 = scmp.ne.s32.totalorder %s90, %s91
    %p103 = scmp.eq.s32.totalorder %s18, 1
    %p104 = por %p102, %p103
    %p106 = scmp.ne.s32.totalorder %s91, %s105
    %p107 = scmp.eq.s32.totalorder %s18, 0
    %p108 = por %p106, %p107
    %s110 = sadd.s32 %s109, 1
    %p113 = scmp.eq.s32.totalorder %s12, 1
    %p114 = scmp.ne.s32.totalorder %s109, %s111
    %p115 = scmp.eq.s32.totalorder %s12, 0
    %p116 = por %p114, %p115
    %p117 = scmp.ne.s32.totalorder %s109, %s111
    %p118 = scmp.eq.s32.totalorder %s17, 1
    %p119 = por %p117, %p118
    %p120 = scmp.ne.s32.totalorder %s111, %s112
    %p121 = scmp.eq.s32.totalorder %s17, 0
    %p122 = por %p120, %p121
    %p123 = scmp.ne.s32.totalorder %s111, %s112
    %p124 = scmp.eq.s32.totalorder %s18, 1
    %p125 = por %p123, %p124
    %p127 = scmp.ne.s32.totalorder %s112, %s126
    %p128 = scmp.eq.s32.totalorder %s18, 0
    %p129 = por %p127, %p128
    %s131 = sadd.s32 %s130, 1
    %p134 = scmp.eq.s32.totalorder %s12, 1
    %p135 = scmp.ne.s32.totalorder %s130, %s132
    %p136 = scmp.eq.s32.totalorder %s12, 0
    %p137 = por %p135, %p136
    %p138 = scmp.ne.s32.totalorder %s130, %s132
    %p139 = scmp.eq.s32.totalorder %s17, 1
    %p140 = por %p138, %p139
    %p141 = scmp.ne.s32.totalorder %s132, %s133
    %p142 = scmp.eq.s32.totalorder %s17, 0
    %p143 = por %p141, %p142
    %p144 = scmp.ne.s32.totalorder %s132, %s133
    %p145 = scmp.eq.s32.totalorder %s18, 1
    %p146 = por %p144, %p145
    %p148 = scmp.ne.s32.totalorder %s133, %s147
    %p149 = scmp.eq.s32.totalorder %s18, 0
    %p150 = por %p148, %p149
    %s151 = ssub.s32 %s12, %s19
    %p152 = scmp.eq.s32.totalorder %s151, 0
    %s154 = sadd.s32 %s153, 1
    %s155 = scalar_select %p152, %s153, %s154
    %p158 = pneg %p152
    %p159 = scmp.eq.s32.totalorder %s12, 1
    %p160 = por %p158, %p159
    %p161 = scmp.ne.s32.totalorder %s153, %s156
    %p162 = scmp.eq.s32.totalorder %s12, 0
    %p163 = por %p161, %p162
    %p164 = scmp.ne.s32.totalorder %s153, %s156
    %p165 = scmp.eq.s32.totalorder %s17, 1
    %p166 = por %p164, %p165
    %p167 = scmp.ne.s32.totalorder %s156, %s157
    %p168 = scmp.eq.s32.totalorder %s17, 0
    %p169 = por %p167, %p168
    %p170 = scmp.ne.s32.totalorder %s156, %s157
    %p171 = scmp.eq.s32.totalorder %s18, 1
    %p172 = por %p170, %p171
    %p174 = scmp.ne.s32.totalorder %s157, %s173
    %p175 = scmp.eq.s32.totalorder %s18, 0
    %p176 = por %p174, %p175
    %p177 = scmp.le.s32.totalorder 1, %s12
    %p178 = scmp.lt.s32.totalorder %s12, 3
    %p179 = pnand %p177, %p178
    %p180 = pneg %p179
    // Predicated region
    $region9: #{basic_res_block.1} parent=5 // pred_check
      _
    $region10: #{basic_res_block.1} parent=5 // pred_check_branch
      %182 = sbr.rel (%p179) target = $region12
    $region11: #{basic_res_block.1} parent=5 // pred_region
      %s183 = ssub.s32 %s12, 1
      // Predicated region
      $region13: #{basic_res_block.1} parent=11 // pred_check
        %p184 = pneg %p59
      $region14: #{basic_res_block.1} parent=11 // pred_check_branch
        %186 = sbr.rel (%p184) target = $region16
      $region15: #{basic_res_block.1} parent=11 // pred_region
        _
      $region16: #{basic_res_block.1} parent=11 // pred_fallthru
        _
      // Predicated region
      $region17: #{basic_res_block.1} parent=11 // pred_check
        %p187 = pneg %p80
      $region18: #{basic_res_block.1} parent=11 // pred_check_branch
        %189 = sbr.rel (%p187) target = $region20
      $region19: #{basic_res_block.1} parent=11 // pred_region
        _
      $region20: #{basic_res_block.1} parent=11 // pred_fallthru
        _
      // Predicated region
      $region21: #{basic_res_block.1} parent=11 // pred_check
        %p190 = pneg %p101
      $region22: #{basic_res_block.1} parent=11 // pred_check_branch
        %192 = sbr.rel (%p190) target = $region24
      $region23: #{basic_res_block.1} parent=11 // pred_region
        _
      $region24: #{basic_res_block.1} parent=11 // pred_fallthru
        _
      // Predicated region
      $region25: #{basic_res_block.1} parent=11 // pred_check
        %p193 = pneg %p122
      $region26: #{basic_res_block.1} parent=11 // pred_check_branch
        %195 = sbr.rel (%p193) target = $region28
      $region27: #{basic_res_block.1} parent=11 // pred_region
        _
      $region28: #{basic_res_block.1} parent=11 // pred_fallthru
        _
      // Predicated region
      $region29: #{basic_res_block.1} parent=11 // pred_check
        %p196 = pneg %p143
      $region30: #{basic_res_block.1} parent=11 // pred_check_branch
        %198 = sbr.rel (%p196) target = $region32
      $region31: #{basic_res_block.1} parent=11 // pred_region
        _
      $region32: #{basic_res_block.1} parent=11 // pred_fallthru
        _
    $region12: #{basic_res_block.1} parent=5 // pred_fallthru
      _
    %p199 = scmp.lt.s32.totalorder %s12, 2
    // Predicated region
    $region33: #{basic_res_block.1} parent=5 // pred_check
      %p200 = pneg %p199
    $region34: #{basic_res_block.1} parent=5 // pred_check_branch
      %202 = sbr.rel (%p200) target = $region36
    $region35: #{basic_res_block.1} parent=5 // pred_region
      // Predicated region
      $region37: #{basic_res_block.1} parent=35 // pred_check
        %p203 = pneg %p32
      $region38: #{basic_res_block.1} parent=35 // pred_check_branch
        %205 = sbr.rel (%p203) target = $region40
      $region39: #{basic_res_block.1} parent=35 // pred_region
        %s206 = smul.u32 2, %s12
        %p207 = scmp.lt.s32.totalorder %s206, 3
        %s208 = scalar_select %p207, %s206, 3
        %s209 = smul.addr %s208, 2
        %s210 = smul.addr %s209, 4
        %s211 = scalar_lea.vmem %s0, %s210
        %s212 = smul.u32 2, %s12
      $region40: #{basic_res_block.1} parent=35 // pred_fallthru
        _
    $region36: #{basic_res_block.1} parent=5 // pred_fallthru
      _
    %p213 = scmp.le.s32.totalorder 1, %s12
    %p214 = scmp.lt.s32.totalorder %s12, 3
    %p215 = pnand %p213, %p214
    %p216 = pneg %p215
    // Predicated region
    $region41: #{basic_res_block.1} parent=5 // pred_check
      _
    $region42: #{basic_res_block.1} parent=5 // pred_check_branch
      %218 = sbr.rel (%p215) target = $region44
    $region43: #{basic_res_block.1} parent=5 // pred_region
      %s219 = ssub.s32 %s12, 1
      %s220 = smul.u32 2, %s17
      %p221 = scmp.lt.s32.totalorder %s220, 3
      %s222 = scalar_select %p221, %s220, 3
      %s223 = smul.addr %s222, 2
      %s224 = smul.addr %s223, 4
      %s225 = scalar_lea.vmem %s0, %s224
      %p226 = pneg %p38
      %p227 = pneg %p35
      %p228 = pneg %p59
      %p229 = pneg %p56
      %p230 = pneg %p80
      %p231 = pneg %p77
      %p232 = pneg %p101
      %p233 = pneg %p98
      %p234 = pneg %p122
      %p235 = pneg %p119
      %p236 = pneg %p143
      %p237 = pneg %p140
      %p238 = pneg %p169
      %p239 = pneg %p166
      %s240 = smul.u32 2, %s17
      %p241 = scmp.lt.s32.totalorder %s240, 3
      %s242 = scalar_select %p241, %s240, 3
      %s243 = smul.addr %s242, 4
      %s244 = smul.addr %s243, 8
      %s245 = scalar_lea.vmem %s6, %s244
      %s246 = smul.u32 2, %s17
      %p247 = scmp.lt.s32.totalorder %s246, 3
      %s248 = scalar_select %p247, %s246, 3
      %s249 = smul.addr %s248, 2
      %s250 = smul.addr %s249, 4
      %s251 = scalar_lea.vmem %s0, %s250
      %s252 = smul.u32 2, %s17
      %s253 = smul.u32 2, %s17
      %p254 = scmp.lt.s32.totalorder %s253, 3
      %s255 = scalar_select %p254, %s253, 3
      %s256 = smul.addr %s255, 4
      %s257 = smul.addr %s256, 8
      %s258 = scalar_lea.vmem %s6, %s257
      %s259 = smul.u32 2, %s17
      %v261 = vld [vmem:[%s1] sm:$0xff]
      %v262 = vld [vmem:[%s1 + $0x8] sm:$0xff]
      %v263 = vld [vmem:[%s1 + $0x10] sm:$0x1]
      %v264 = vld [vmem:[%s1 + $0x18] sm:$0x1]
      %v265 = vld [vmem:[%s251] sm:$0xff]
      %v266 = vunpack.c.l.bf16 %v265
      %v267 = vunpack.c.h.bf16 %v265
      %s268 = scalar_lea.vmem %s251, 8
      %v269 = vld [vmem:[%s268] sm:$0xff]
      %v270 = vunpack.c.l.bf16 %v269
      %v271 = vunpack.c.h.bf16 %v269
      %v272 = vlaneseq
      %v273 = vshrl.u32 %v272, 7
      %v274 = vsub.s32 0, %v273
      %v275 = vrot.slane %v261, %v274
      %v276 = vlaneseq
      %v277 = vshrl.u32 %v276, 7
      %v278 = vsub.s32 0, %v277
      %v279 = vrot.slane %v262, %v278
      %282 = vrot.lane.b32.xlu0 %v275, 111
      %v283 = vpop.permute.xlu0 %282
      %284 = vrot.lane.b32.xlu0 %v279, 111
      %v285 = vpop.permute.xlu0 %284
      %vm286 = vcmask 908288
      %v287 = vsel %vm286, %v283, %v285
      %v291 = vmul.f32 %v283, 0.0
      %v292 = vmul.f32 %v266, %v287
      %v293 = vmul.f32 %v267, %v285
      %v294 = vlaneseq
      %v295 = vshrl.u32 %v294, 7
      %v296 = vsub.s32 1, %v295
      %v297 = vrot.slane %v261, %v296
      %v298 = vlaneseq
      %v299 = vshrl.u32 %v298, 7
      %v300 = vsub.s32 1, %v299
      %v301 = vrot.slane %v262, %v300
      %304 = vrot.lane.b32.xlu0 %v297, 112
      %v305 = vpop.permute.xlu0 %304
      %306 = vrot.lane.b32.xlu0 %v301, 112
      %v307 = vpop.permute.xlu0 %306
      %vm308 = vcmask 916480
      %v309 = vsel %vm308, %v305, %v307
      %v313 = vmul.f32 %v305, 0.0
      %v314 = vmul.f32 %v266, %v309
      %v315 = vmul.f32 %v267, %v307
      %v316 = vlaneseq
      %v317 = vshrl.u32 %v316, 7
      %v318 = vsub.s32 2, %v317
      %v319 = vrot.slane %v261, %v318
      %v320 = vlaneseq
      %v321 = vshrl.u32 %v320, 7
      %v322 = vsub.s32 2, %v321
      %v323 = vrot.slane %v262, %v322
      %326 = vrot.lane.b32.xlu0 %v319, 113
      %v327 = vpop.permute.xlu0 %326
      %328 = vrot.lane.b32.xlu0 %v323, 113
      %v329 = vpop.permute.xlu0 %328
      %vm330 = vcmask 924672
      %v331 = vsel %vm330, %v327, %v329
      %v335 = vmul.f32 %v327, 0.0
      %v336 = vmul.f32 %v266, %v331
      %v337 = vmul.f32 %v267, %v329
      %v338 = vlaneseq
      %v339 = vshrl.u32 %v338, 7
      %v340 = vsub.s32 3, %v339
      %v341 = vrot.slane %v261, %v340
      %v342 = vlaneseq
      %v343 = vshrl.u32 %v342, 7
      %v344 = vsub.s32 3, %v343
      %v345 = vrot.slane %v262, %v344
      %348 = vrot.lane.b32.xlu0 %v341, 127
      %v349 = vpop.permute.xlu0 %348
      %350 = vrot.lane.b32.xlu0 %v345, 127
      %v351 = vpop.permute.xlu0 %350
      %vm352 = vcmask 1039360
      %v353 = vsel %vm352, %v349, %v351
      %v357 = vmul.f32 %v349, 0.0
      %v358 = vmul.f32 %v266, %v353
      %v359 = vmul.f32 %v267, %v351
      %v360 = vlaneseq
      %v361 = vshrl.u32 %v360, 7
      %v362 = vsub.s32 4, %v361
      %v363 = vrot.slane %v261, %v362
      %v364 = vlaneseq
      %v365 = vshrl.u32 %v364, 7
      %v366 = vsub.s32 4, %v365
      %v367 = vrot.slane %v262, %v366
      %v368 = vmul.f32 %v266, %v363
      %v369 = vmul.f32 %v267, %v367
      %v370 = vlaneseq
      %v371 = vshrl.u32 %v370, 7
      %v372 = vsub.s32 5, %v371
      %v373 = vrot.slane %v261, %v372
      %v374 = vlaneseq
      %v375 = vshrl.u32 %v374, 7
      %v376 = vsub.s32 5, %v375
      %v377 = vrot.slane %v262, %v376
      %380 = vrot.lane.b32.xlu0 %v373, 1
      %v381 = vpop.permute.xlu0 %380
      %382 = vrot.lane.b32.xlu0 %v377, 1
      %v383 = vpop.permute.xlu0 %382
      %vm384 = vcmask 7168
      %v385 = vsel %vm384, %v381, %v383
      %v389 = vmul.f32 %v266, %v381
      %v390 = vmul.f32 %v267, %v385
      %v391 = vmul.f32 %v383, 0.0
      %v392 = vlaneseq
      %v393 = vshrl.u32 %v392, 7
      %v394 = vsub.s32 6, %v393
      %v395 = vrot.slane %v261, %v394
      %v396 = vlaneseq
      %v397 = vshrl.u32 %v396, 7
      %v398 = vsub.s32 6, %v397
      %v399 = vrot.slane %v262, %v398
      %402 = vrot.lane.b32.xlu0 %v395, 15
      %v403 = vpop.permute.xlu0 %402
      %404 = vrot.lane.b32.xlu0 %v399, 15
      %v405 = vpop.permute.xlu0 %404
      %vm406 = vcmask 121856
      %v407 = vsel %vm406, %v403, %v405
      %v411 = vmul.f32 %v266, %v403
      %v412 = vmul.f32 %v267, %v407
      %v413 = vmul.f32 %v405, 0.0
      %v414 = vlaneseq
      %v415 = vshrl.u32 %v414, 7
      %v416 = vsub.s32 7, %v415
      %v417 = vrot.slane %v261, %v416
      %v418 = vlaneseq
      %v419 = vshrl.u32 %v418, 7
      %v420 = vsub.s32 7, %v419
      %v421 = vrot.slane %v262, %v420
      %424 = vrot.lane.b32.xlu0 %v417, 16
      %v425 = vpop.permute.xlu0 %424
      %426 = vrot.lane.b32.xlu0 %v421, 16
      %v427 = vpop.permute.xlu0 %426
      %vm428 = vcmask 130048
      %v429 = vsel %vm428, %v425, %v427
      %v433 = vmul.f32 %v266, %v425
      %v434 = vmul.f32 %v267, %v429
      %v435 = vmul.f32 %v427, 0.0
      %v436 = vlaneseq
      %v437 = vshrl.u32 %v436, 7
      %v438 = vsub.s32 0, %v437
      %v439 = vrot.slane %v263, %v438
      %v440 = vlaneseq
      %v441 = vshrl.u32 %v440, 7
      %v442 = vsub.s32 0, %v441
      %v443 = vrot.slane %v264, %v442
      %446 = vrot.lane.b32.xlu0 %v439, 17
      %v447 = vpop.permute.xlu0 %446
      %448 = vrot.lane.b32.xlu0 %v443, 17
      %v449 = vpop.permute.xlu0 %448
      %vm450 = vcmask 138240
      %v451 = vsel %vm450, %v447, %v449
      %v455 = vmul.f32 %v266, %v447
      %v456 = vmul.f32 %v267, %v451
      %v457 = vmul.f32 %v449, 0.0
      %461 = vrot.lane.b32.xlu0 %v313, 127
      %v462 = vpop.permute.xlu0 %461
      %463 = vrot.lane.b32.xlu0 %v314, 127
      %v464 = vpop.permute.xlu0 %463
      %465 = vrot.lane.b32.xlu0 %v315, 127
      %v466 = vpop.permute.xlu0 %465
      %v467 = vsel %vm352, %v462, %v464
      %v468 = vsel %vm352, %v464, %v466
      %472 = vrot.lane.b32.xlu0 %v335, 126
      %v473 = vpop.permute.xlu0 %472
      %474 = vrot.lane.b32.xlu0 %v336, 126
      %v475 = vpop.permute.xlu0 %474
      %476 = vrot.lane.b32.xlu0 %v337, 126
      %v477 = vpop.permute.xlu0 %476
      %vm478 = vcmask 1031168
      %v479 = vsel %vm478, %v473, %v475
      %v480 = vsel %vm478, %v475, %v477
      %484 = vrot.lane.b32.xlu0 %v357, 112
      %v485 = vpop.permute.xlu0 %484
      %486 = vrot.lane.b32.xlu0 %v358, 112
      %v487 = vpop.permute.xlu0 %486
      %488 = vrot.lane.b32.xlu0 %v359, 112
      %v489 = vpop.permute.xlu0 %488
      %v490 = vsel %vm308, %v485, %v487
      %v491 = vsel %vm308, %v487, %v489
      %494 = vrot.lane.b32.xlu0 %v368, 111
      %v495 = vpop.permute.xlu0 %494
      %496 = vrot.lane.b32.xlu0 %v369, 111
      %v497 = vpop.permute.xlu0 %496
      %v498 = vsel %vm286, %v495, %v497
      %502 = vrot.lane.b32.xlu0 %v389, 110
      %v503 = vpop.permute.xlu0 %502
      %504 = vrot.lane.b32.xlu0 %v390, 110
      %v505 = vpop.permute.xlu0 %504
      %506 = vrot.lane.b32.xlu0 %v391, 110
      %v507 = vpop.permute.xlu0 %506
      %vm508 = vcmask 900096
      %v509 = vsel %vm508, %v503, %v505
      %v510 = vsel %vm508, %v505, %v507
      %514 = vrot.lane.b32.xlu0 %v411, 96
      %v515 = vpop.permute.xlu0 %514
      %516 = vrot.lane.b32.xlu0 %v412, 96
      %v517 = vpop.permute.xlu0 %516
      %518 = vrot.lane.b32.xlu0 %v413, 96
      %v519 = vpop.permute.xlu0 %518
      %vm520 = vcmask 785408
      %v521 = vsel %vm520, %v515, %v517
      %v522 = vsel %vm520, %v517, %v519
      %526 = vrot.lane.b32.xlu0 %v433, 95
      %v527 = vpop.permute.xlu0 %526
      %528 = vrot.lane.b32.xlu0 %v434, 95
      %v529 = vpop.permute.xlu0 %528
      %530 = vrot.lane.b32.xlu0 %v435, 95
      %v531 = vpop.permute.xlu0 %530
      %vm532 = vcmask 777216
      %v533 = vsel %vm532, %v527, %v529
      %v534 = vsel %vm532, %v529, %v531
      %538 = vrot.lane.b32.xlu0 %v455, 94
      %v539 = vpop.permute.xlu0 %538
      %540 = vrot.lane.b32.xlu0 %v456, 94
      %v541 = vpop.permute.xlu0 %540
      %542 = vrot.lane.b32.xlu0 %v457, 94
      %v543 = vpop.permute.xlu0 %542
      %vm544 = vcmask 769024
      %v545 = vsel %vm544, %v539, %v541
      %v546 = vsel %vm544, %v541, %v543
      %v547 = vmul.f32 %v270, %v287
      %v548 = vmul.f32 %v271, %v285
      %v549 = vmul.f32 %v270, %v309
      %v550 = vmul.f32 %v271, %v307
      %v551 = vmul.f32 %v270, %v331
      %v552 = vmul.f32 %v271, %v329
      %v553 = vmul.f32 %v270, %v353
      %v554 = vmul.f32 %v271, %v351
      %v555 = vmul.f32 %v270, %v363
      %v556 = vmul.f32 %v271, %v367
      %v557 = vmul.f32 %v270, %v381
      %v558 = vmul.f32 %v271, %v385
      %v559 = vmul.f32 %v270, %v403
      %v560 = vmul.f32 %v271, %v407
      %v561 = vmul.f32 %v270, %v425
      %v562 = vmul.f32 %v271, %v429
      %v563 = vmul.f32 %v270, %v447
      %v564 = vmul.f32 %v271, %v451
      %567 = vrot.lane.b32.xlu0 %v549, 127
      %v568 = vpop.permute.xlu0 %567
      %569 = vrot.lane.b32.xlu0 %v550, 127
      %v570 = vpop.permute.xlu0 %569
      %v571 = vsel %vm352, %v462, %v568
      %v572 = vsel %vm352, %v568, %v570
      %575 = vrot.lane.b32.xlu0 %v551, 126
      %v576 = vpop.permute.xlu0 %575
      %577 = vrot.lane.b32.xlu0 %v552, 126
      %v578 = vpop.permute.xlu0 %577
      %v579 = vsel %vm478, %v473, %v576
      %v580 = vsel %vm478, %v576, %v578
      %583 = vrot.lane.b32.xlu0 %v553, 112
      %v584 = vpop.permute.xlu0 %583
      %585 = vrot.lane.b32.xlu0 %v554, 112
      %v586 = vpop.permute.xlu0 %585
      %v587 = vsel %vm308, %v485, %v584
      %v588 = vsel %vm308, %v584, %v586
      %591 = vrot.lane.b32.xlu0 %v555, 111
      %v592 = vpop.permute.xlu0 %591
      %593 = vrot.lane.b32.xlu0 %v556, 111
      %v594 = vpop.permute.xlu0 %593
      %v595 = vsel %vm286, %v592, %v594
      %598 = vrot.lane.b32.xlu0 %v557, 110
      %v599 = vpop.permute.xlu0 %598
      %600 = vrot.lane.b32.xlu0 %v558, 110
      %v601 = vpop.permute.xlu0 %600
      %v602 = vsel %vm508, %v599, %v601
      %v603 = vsel %vm508, %v601, %v507
      %606 = vrot.lane.b32.xlu0 %v559, 96
      %v607 = vpop.permute.xlu0 %606
      %608 = vrot.lane.b32.xlu0 %v560, 96
      %v609 = vpop.permute.xlu0 %608
      %v610 = vsel %vm520, %v607, %v609
      %v611 = vsel %vm520, %v609, %v519
      %614 = vrot.lane.b32.xlu0 %v561, 95
      %v615 = vpop.permute.xlu0 %614
      %616 = vrot.lane.b32.xlu0 %v562, 95
      %v617 = vpop.permute.xlu0 %616
      %v618 = vsel %vm532, %v615, %v617
      %v619 = vsel %vm532, %v617, %v531
      %622 = vrot.lane.b32.xlu0 %v563, 94
      %v623 = vpop.permute.xlu0 %622
      %624 = vrot.lane.b32.xlu0 %v564, 94
      %v625 = vpop.permute.xlu0 %624
      %v626 = vsel %vm544, %v623, %v625
      %v627 = vsel %vm544, %v625, %v543
      %631 = vrot.lane.b32.xlu0 %v291, 17
      %v632 = vpop.permute.xlu0 %631
      %633 = vrot.lane.b32.xlu0 %v292, 17
      %v634 = vpop.permute.xlu0 %633
      %635 = vrot.lane.b32.xlu0 %v293, 17
      %v636 = vpop.permute.xlu0 %635
      %637 = vrot.lane.b32.xlu0 %v467, 17
      %v638 = vpop.permute.xlu0 %637
      %639 = vrot.lane.b32.xlu0 %v468, 17
      %v640 = vpop.permute.xlu0 %639
      %641 = vrot.lane.b32.xlu0 %v466, 17
      %v642 = vpop.permute.xlu0 %641
      %643 = vrot.lane.b32.xlu0 %v479, 17
      %v644 = vpop.permute.xlu0 %643
      %645 = vrot.lane.b32.xlu0 %v480, 17
      %v646 = vpop.permute.xlu0 %645
      %647 = vrot.lane.b32.xlu0 %v477, 17
      %v648 = vpop.permute.xlu0 %647
      %649 = vrot.lane.b32.xlu0 %v490, 17
      %v650 = vpop.permute.xlu0 %649
      %651 = vrot.lane.b32.xlu0 %v491, 17
      %v652 = vpop.permute.xlu0 %651
      %653 = vrot.lane.b32.xlu0 %v489, 17
      %v654 = vpop.permute.xlu0 %653
      %655 = vrot.lane.b32.xlu0 %v495, 17
      %v656 = vpop.permute.xlu0 %655
      %657 = vrot.lane.b32.xlu0 %v498, 17
      %v658 = vpop.permute.xlu0 %657
      %659 = vrot.lane.b32.xlu0 %v497, 17
      %v660 = vpop.permute.xlu0 %659
      %661 = vrot.lane.b32.xlu0 %v503, 17
      %v662 = vpop.permute.xlu0 %661
      %663 = vrot.lane.b32.xlu0 %v509, 17
      %v664 = vpop.permute.xlu0 %663
      %665 = vrot.lane.b32.xlu0 %v510, 17
      %v666 = vpop.permute.xlu0 %665
      %667 = vrot.lane.b32.xlu0 %v515, 17
      %v668 = vpop.permute.xlu0 %667
      %669 = vrot.lane.b32.xlu0 %v521, 17
      %v670 = vpop.permute.xlu0 %669
      %671 = vrot.lane.b32.xlu0 %v522, 17
      %v672 = vpop.permute.xlu0 %671
      %673 = vrot.lane.b32.xlu0 %v527, 17
      %v674 = vpop.permute.xlu0 %673
      %675 = vrot.lane.b32.xlu0 %v533, 17
      %v676 = vpop.permute.xlu0 %675
      %677 = vrot.lane.b32.xlu0 %v534, 17
      %v678 = vpop.permute.xlu0 %677
      %679 = vrot.lane.b32.xlu0 %v539, 17
      %v680 = vpop.permute.xlu0 %679
      %681 = vrot.lane.b32.xlu0 %v545, 17
      %v682 = vpop.permute.xlu0 %681
      %683 = vrot.lane.b32.xlu0 %v546, 17
      %v684 = vpop.permute.xlu0 %683
      %v685 = vsel %vm450, %v632, %v634
      %v686 = vsel %vm450, %v634, %v636
      %v687 = vsel %vm450, %v638, %v640
      %v688 = vsel %vm450, %v640, %v642
      %v689 = vsel %vm450, %v644, %v646
      %v690 = vsel %vm450, %v646, %v648
      %v691 = vsel %vm450, %v650, %v652
      %v692 = vsel %vm450, %v652, %v654
      %v693 = vsel %vm450, %v656, %v658
      %v694 = vsel %vm450, %v658, %v660
      %v695 = vsel %vm450, %v662, %v664
      %v696 = vsel %vm450, %v664, %v666
      %v697 = vsel %vm450, %v668, %v670
      %v698 = vsel %vm450, %v670, %v672
      %v699 = vsel %vm450, %v674, %v676
      %v700 = vsel %vm450, %v676, %v678
      %v701 = vsel %vm450, %v680, %v682
      %v702 = vsel %vm450, %v682, %v684
      %723 = vrot.lane.b32.xlu0 %v547, 17
      %v724 = vpop.permute.xlu0 %723
      %725 = vrot.lane.b32.xlu0 %v548, 17
      %v726 = vpop.permute.xlu0 %725
      %727 = vrot.lane.b32.xlu0 %v571, 17
      %v728 = vpop.permute.xlu0 %727
      %729 = vrot.lane.b32.xlu0 %v572, 17
      %v730 = vpop.permute.xlu0 %729
      %731 = vrot.lane.b32.xlu0 %v570, 17
      %v732 = vpop.permute.xlu0 %731
      %733 = vrot.lane.b32.xlu0 %v579, 17
      %v734 = vpop.permute.xlu0 %733
      %735 = vrot.lane.b32.xlu0 %v580, 17
      %v736 = vpop.permute.xlu0 %735
      %737 = vrot.lane.b32.xlu0 %v578, 17
      %v738 = vpop.permute.xlu0 %737
      %739 = vrot.lane.b32.xlu0 %v587, 17
      %v740 = vpop.permute.xlu0 %739
      %741 = vrot.lane.b32.xlu0 %v588, 17
      %v742 = vpop.permute.xlu0 %741
      %743 = vrot.lane.b32.xlu0 %v586, 17
      %v744 = vpop.permute.xlu0 %743
      %745 = vrot.lane.b32.xlu0 %v592, 17
      %v746 = vpop.permute.xlu0 %745
      %747 = vrot.lane.b32.xlu0 %v595, 17
      %v748 = vpop.permute.xlu0 %747
      %749 = vrot.lane.b32.xlu0 %v594, 17
      %v750 = vpop.permute.xlu0 %749
      %751 = vrot.lane.b32.xlu0 %v599, 17
      %v752 = vpop.permute.xlu0 %751
      %753 = vrot.lane.b32.xlu0 %v602, 17
      %v754 = vpop.permute.xlu0 %753
      %755 = vrot.lane.b32.xlu0 %v603, 17
      %v756 = vpop.permute.xlu0 %755
      %757 = vrot.lane.b32.xlu0 %v607, 17
      %v758 = vpop.permute.xlu0 %757
      %759 = vrot.lane.b32.xlu0 %v610, 17
      %v760 = vpop.permute.xlu0 %759
      %761 = vrot.lane.b32.xlu0 %v611, 17
      %v762 = vpop.permute.xlu0 %761
      %763 = vrot.lane.b32.xlu0 %v615, 17
      %v764 = vpop.permute.xlu0 %763
      %765 = vrot.lane.b32.xlu0 %v618, 17
      %v766 = vpop.permute.xlu0 %765
      %767 = vrot.lane.b32.xlu0 %v619, 17
      %v768 = vpop.permute.xlu0 %767
      %769 = vrot.lane.b32.xlu0 %v623, 17
      %v770 = vpop.permute.xlu0 %769
      %771 = vrot.lane.b32.xlu0 %v626, 17
      %v772 = vpop.permute.xlu0 %771
      %773 = vrot.lane.b32.xlu0 %v627, 17
      %v774 = vpop.permute.xlu0 %773
      %v775 = vsel %vm450, %v632, %v724
      %v776 = vsel %vm450, %v724, %v726
      %v777 = vsel %vm450, %v728, %v730
      %v778 = vsel %vm450, %v730, %v732
      %v779 = vsel %vm450, %v734, %v736
      %v780 = vsel %vm450, %v736, %v738
      %v781 = vsel %vm450, %v740, %v742
      %v782 = vsel %vm450, %v742, %v744
      %v783 = vsel %vm450, %v746, %v748
      %v784 = vsel %vm450, %v748, %v750
      %v785 = vsel %vm450, %v752, %v754
      %v786 = vsel %vm450, %v754, %v756
      %v787 = vsel %vm450, %v758, %v760
      %v788 = vsel %vm450, %v760, %v762
      %v789 = vsel %vm450, %v764, %v766
      %v790 = vsel %vm450, %v766, %v768
      %v791 = vsel %vm450, %v770, %v772
      %v792 = vsel %vm450, %v772, %v774
      %v811 = vld [vmem:[%s2] sm:$0xf]
      %v812 = vld [vmem:[%s2 + $0x4] sm:$0xf]
      %v813 = vpack.c.bf16 %v687, %v685
      %v814 = vpack.c.bf16 %v688, %v686
      %v815 = vpack.c.bf16 %v777, %v775
      %v816 = vpack.c.bf16 %v778, %v776
      %v817 = vpack.c.bf16 %v691, %v689
      %v818 = vpack.c.bf16 %v692, %v690
      %v819 = vpack.c.bf16 %v781, %v779
      %v820 = vpack.c.bf16 %v782, %v780
      %v821 = vpack.c.bf16 %v695, %v693
      %v822 = vpack.c.bf16 %v696, %v694
      %v823 = vpack.c.bf16 %v785, %v783
      %v824 = vpack.c.bf16 %v786, %v784
      %v825 = vpack.c.bf16 %v699, %v697
      %v826 = vpack.c.bf16 %v700, %v698
      %v827 = vpack.c.bf16 %v789, %v787
      %v828 = vpack.c.bf16 %v790, %v788
      %v829 = vpack.c.bf16 %v701, %v701
      %v830 = vpack.c.bf16 %v702, %v702
      %v831 = vpack.c.bf16 %v791, %v791
      %v832 = vpack.c.bf16 %v792, %v792
      %v833 = vld [vmem:[%s3] sm:$0xff]
      %v834 = vld [vmem:[%s3 + $0x8] sm:$0xff]
      %836 = vset.pattern.permute.xlu0 0
      %837 = vperm.xlu0 %836, %v833
      %v838 = vpop.permute.xlu0 %837
      %841 = vset.pattern.permute.xlu0 0
      %842 = vperm.xlu0 %841, %v834
      %v843 = vpop.permute.xlu0 %842
      %v847 = vunpack.c.l.b16 %v811
      %v848 = vunpack.c.l.b16 %v812
      %v849 = vpack.c.b16 %v848, %v847
      %vm850 = vcmask 588800
      %v852 = vsel %vm850, %v849, 0
      %vm854 = vcmask 1043456
      %v856 = vsel %vm854, %v829, 0
      %v859 = vsel %vm854, %v830, 0
      %v862 = vsel %vm854, %v831, 0
      %v865 = vsel %vm854, %v832, 0
      %867 = vmatprep.subr.bf16.mxu0 %v814
      %868 = vmatpush1.bf16.msra.mxu0 %v813
      %869 = vmatprep.subr.bf16.mxu0 %v818
      %870 = vmatpush1.bf16.msra.mxu0 %v817
      %871 = vmatprep.subr.bf16.mxu0 %v822
      %872 = vmatpush1.bf16.msra.mxu0 %v821
      %873 = vmatprep.subr.bf16.mxu0 %v826
      %874 = vmatpush1.bf16.msra.mxu0 %v825
      %875 = vmatprep.subr.bf16.mxu0 %v859
      %876 = vmatpush1.bf16.msra.mxu0 %v856
      %877 = vmatprep.subr.bf16.mxu0 0
      %878 = vmatpush1.bf16.msra.mxu0 0
      %879 = vmatprep.subr.bf16.mxu0 0
      %880 = vmatpush1.bf16.msra.mxu0 0
      %881 = vmatprep.subr.bf16.mxu0 0
      %882 = vmatpush1.bf16.msra.mxu0 0
      %883 = vmatprep.subr.bf16.mxu0 0
      %884 = vmatpush1.bf16.msra.mxu0 0
      %885 = vmatprep.subr.bf16.mxu0 0
      %886 = vmatpush1.bf16.msra.mxu0 0
      %887 = vmatprep.subr.bf16.mxu0 0
      %888 = vmatpush1.bf16.msra.mxu0 0
      %889 = vmatprep.subr.bf16.mxu0 0
      %890 = vmatpush1.bf16.msra.mxu0 0
      %891 = vmatprep.subr.bf16.mxu0 0
      %892 = vmatpush1.bf16.msra.mxu0 0
      %893 = vmatprep.subr.bf16.mxu0 0
      %894 = vmatpush1.bf16.msra.mxu0 0
      %895 = vmatprep.subr.bf16.mxu0 0
      %896 = vmatpush1.bf16.msra.mxu0 0
      %897 = vmatprep.subr.bf16.mxu0 0
      %898 = vmatpush1.bf16.msra.mxu0 0
      %899 = vmatprep.mubr.bf16.mxu0 0
      %900 = vmatmul.mubr.bf16.gmra.mrb[0].mxu0 %v852
      %v901 = vpop.f32.mrb[0].mxu0
      %v902 = vadd.f32 %v838, %v901
      %v903 = vpop.f32.mrb[0].mxu0
      %v904 = vadd.f32 %v838, %v903
      %v905 = vpop.f32.mrb[0].mxu0
      %v906 = vadd.f32 %v843, %v905
      %v907 = vpop.f32.mrb[0].mxu0
      %v908 = vadd.f32 %v843, %v907
      %909 = vdwg.mxu0
      %910 = vmatprep.subr.bf16.mxu0 %v816
      %911 = vmatpush1.bf16.msra.mxu0 %v815
      %912 = vmatprep.subr.bf16.mxu0 %v820
      %913 = vmatpush1.bf16.msra.mxu0 %v819
      %914 = vmatprep.subr.bf16.mxu0 %v824
      %915 = vmatpush1.bf16.msra.mxu0 %v823
      %916 = vmatprep.subr.bf16.mxu0 %v828
      %917 = vmatpush1.bf16.msra.mxu0 %v827
      %918 = vmatprep.subr.bf16.mxu0 %v865
      %919 = vmatpush1.bf16.msra.mxu0 %v862
      %920 = vmatprep.subr.bf16.mxu0 0
      %921 = vmatpush1.bf16.msra.mxu0 0
      %922 = vmatprep.subr.bf16.mxu0 0
      %923 = vmatpush1.bf16.msra.mxu0 0
      %924 = vmatprep.subr.bf16.mxu0 0
      %925 = vmatpush1.bf16.msra.mxu0 0
      %926 = vmatprep.subr.bf16.mxu0 0
      %927 = vmatpush1.bf16.msra.mxu0 0
      %928 = vmatprep.subr.bf16.mxu0 0
      %929 = vmatpush1.bf16.msra.mxu0 0
      %930 = vmatprep.subr.bf16.mxu0 0
      %931 = vmatpush1.bf16.msra.mxu0 0
      %932 = vmatprep.subr.bf16.mxu0 0
      %933 = vmatpush1.bf16.msra.mxu0 0
      %934 = vmatprep.subr.bf16.mxu0 0
      %935 = vmatpush1.bf16.msra.mxu0 0
      %936 = vmatprep.subr.bf16.mxu0 0
      %937 = vmatpush1.bf16.msra.mxu0 0
      %938 = vmatprep.subr.bf16.mxu0 0
      %939 = vmatpush1.bf16.msra.mxu0 0
      %940 = vmatprep.subr.bf16.mxu0 0
      %941 = vmatpush1.bf16.msra.mxu0 0
      %942 = vmatprep.mubr.bf16.mxu0 0
      %943 = vmatmul.mubr.bf16.gmra.mrb[0].mxu0 %v852
      %v944 = vpop.f32.mrb[0].mxu0
      %v945 = vadd.f32 %v838, %v944
      %v946 = vpop.f32.mrb[0].mxu0
      %v947 = vadd.f32 %v838, %v946
      %v948 = vpop.f32.mrb[0].mxu0
      %v949 = vadd.f32 %v843, %v948
      %v950 = vpop.f32.mrb[0].mxu0
      %v951 = vadd.f32 %v843, %v950
      %952 = vdwg.mxu0
      %v953 = vmax.f32 %v902, 0.0
      %v954 = vmax.f32 %v904, 0.0
      %v955 = vmax.f32 %v945, 0.0
      %v956 = vmax.f32 %v947, 0.0
      %v957 = vmax.f32 %v906, 0.0
      %v958 = vmax.f32 %v908, 0.0
      %v959 = vmax.f32 %v949, 0.0
      %v960 = vmax.f32 %v951, 0.0
      %v961 = vmul.f32 %v953, %v287
      %v962 = vmul.f32 %v954, %v285
      %v963 = vmul.f32 %v957, %v287
      %v964 = vmul.f32 %v958, %v285
      %v965 = vmul.f32 %v953, %v309
      %v966 = vmul.f32 %v954, %v307
      %v967 = vmul.f32 %v957, %v309
      %v968 = vmul.f32 %v958, %v307
      %v969 = vmul.f32 %v953, %v331
      %v970 = vmul.f32 %v954, %v329
      %v971 = vmul.f32 %v957, %v331
      %v972 = vmul.f32 %v958, %v329
      %v973 = vmul.f32 %v953, %v353
      %v974 = vmul.f32 %v954, %v351
      %v975 = vmul.f32 %v957, %v353
      %v976 = vmul.f32 %v958, %v351
      %v977 = vmul.f32 %v953, %v363
      %v978 = vmul.f32 %v954, %v367
      %v979 = vmul.f32 %v957, %v363
      %v980 = vmul.f32 %v958, %v367
      %v981 = vmul.f32 %v953, %v381
      %v982 = vmul.f32 %v954, %v385
      %v983 = vmul.f32 %v957, %v381
      %v984 = vmul.f32 %v958, %v385
      %v985 = vmul.f32 %v953, %v403
      %v986 = vmul.f32 %v954, %v407
      %v987 = vmul.f32 %v957, %v403
      %v988 = vmul.f32 %v958, %v407
      %v989 = vmul.f32 %v953, %v425
      %v990 = vmul.f32 %v954, %v429
      %v991 = vmul.f32 %v957, %v425
      %v992 = vmul.f32 %v958, %v429
      %v993 = vmul.f32 %v953, %v447
      %v994 = vmul.f32 %v954, %v451
      %v995 = vmul.f32 %v957, %v447
      %v996 = vmul.f32 %v958, %v451
      %1001 = vrot.lane.b32.xlu0 %v965, 127
      %v1002 = vpop.permute.xlu0 %1001
      %1003 = vrot.lane.b32.xlu0 %v966, 127
      %v1004 = vpop.permute.xlu0 %1003
      %1005 = vrot.lane.b32.xlu0 %v967, 127
      %v1006 = vpop.permute.xlu0 %1005
      %1007 = vrot.lane.b32.xlu0 %v968, 127
      %v1008 = vpop.permute.xlu0 %1007
      %v1009 = vsel %vm352, %v462, %v1002
      %v1010 = vsel %vm352, %v1002, %v1004
      %v1011 = vsel %vm352, %v462, %v1006
      %v1012 = vsel %vm352, %v1006, %v1008
      %1017 = vrot.lane.b32.xlu0 %v969, 126
      %v1018 = vpop.permute.xlu0 %1017
      %1019 = vrot.lane.b32.xlu0 %v970, 126
      %v1020 = vpop.permute.xlu0 %1019
      %1021 = vrot.lane.b32.xlu0 %v971, 126
      %v1022 = vpop.permute.xlu0 %1021
      %1023 = vrot.lane.b32.xlu0 %v972, 126
      %v1024 = vpop.permute.xlu0 %1023
      %v1025 = vsel %vm478, %v473, %v1018
      %v1026 = vsel %vm478, %v1018, %v1020
      %v1027 = vsel %vm478, %v473, %v1022
      %v1028 = vsel %vm478, %v1022, %v1024
      %1033 = vrot.lane.b32.xlu0 %v973, 112
      %v1034 = vpop.permute.xlu0 %1033
      %1035 = vrot.lane.b32.xlu0 %v974, 112
      %v1036 = vpop.permute.xlu0 %1035
      %1037 = vrot.lane.b32.xlu0 %v975, 112
      %v1038 = vpop.permute.xlu0 %1037
      %1039 = vrot.lane.b32.xlu0 %v976, 112
      %v1040 = vpop.permute.xlu0 %1039
      %v1041 = vsel %vm308, %v485, %v1034
      %v1042 = vsel %vm308, %v1034, %v1036
      %v1043 = vsel %vm308, %v485, %v1038
      %v1044 = vsel %vm308, %v1038, %v1040
      %1049 = vrot.lane.b32.xlu0 %v977, 111
      %v1050 = vpop.permute.xlu0 %1049
      %1051 = vrot.lane.b32.xlu0 %v978, 111
      %v1052 = vpop.permute.xlu0 %1051
      %1053 = vrot.lane.b32.xlu0 %v979, 111
      %v1054 = vpop.permute.xlu0 %1053
      %1055 = vrot.lane.b32.xlu0 %v980, 111
      %v1056 = vpop.permute.xlu0 %1055
      %v1057 = vsel %vm286, %v1050, %v1052
      %v1058 = vsel %vm286, %v1054, %v1056
      %1063 = vrot.lane.b32.xlu0 %v981, 110
      %v1064 = vpop.permute.xlu0 %1063
      %1065 = vrot.lane.b32.xlu0 %v982, 110
      %v1066 = vpop.permute.xlu0 %1065
      %1067 = vrot.lane.b32.xlu0 %v983, 110
      %v1068 = vpop.permute.xlu0 %1067
      %1069 = vrot.lane.b32.xlu0 %v984, 110
      %v1070 = vpop.permute.xlu0 %1069
      %v1071 = vsel %vm508, %v1064, %v1066
      %v1072 = vsel %vm508, %v1066, %v507
      %v1073 = vsel %vm508, %v1068, %v1070
      %v1074 = vsel %vm508, %v1070, %v507
      %1079 = vrot.lane.b32.xlu0 %v985, 96
      %v1080 = vpop.permute.xlu0 %1079
      %1081 = vrot.lane.b32.xlu0 %v986, 96
      %v1082 = vpop.permute.xlu0 %1081
      %1083 = vrot.lane.b32.xlu0 %v987, 96
      %v1084 = vpop.permute.xlu0 %1083
      %1085 = vrot.lane.b32.xlu0 %v988, 96
      %v1086 = vpop.permute.xlu0 %1085
      %v1087 = vsel %vm520, %v1080, %v1082
      %v1088 = vsel %vm520, %v1082, %v519
      %v1089 = vsel %vm520, %v1084, %v1086
      %v1090 = vsel %vm520, %v1086, %v519
      %1095 = vrot.lane.b32.xlu0 %v989, 95
      %v1096 = vpop.permute.xlu0 %1095
      %1097 = vrot.lane.b32.xlu0 %v990, 95
      %v1098 = vpop.permute.xlu0 %1097
      %1099 = vrot.lane.b32.xlu0 %v991, 95
      %v1100 = vpop.permute.xlu0 %1099
      %1101 = vrot.lane.b32.xlu0 %v992, 95
      %v1102 = vpop.permute.xlu0 %1101
      %v1103 = vsel %vm532, %v1096, %v1098
      %v1104 = vsel %vm532, %v1098, %v531
      %v1105 = vsel %vm532, %v1100, %v1102
      %v1106 = vsel %vm532, %v1102, %v531
      %1111 = vrot.lane.b32.xlu0 %v993, 94
      %v1112 = vpop.permute.xlu0 %1111
      %1113 = vrot.lane.b32.xlu0 %v994, 94
      %v1114 = vpop.permute.xlu0 %1113
      %1115 = vrot.lane.b32.xlu0 %v995, 94
      %v1116 = vpop.permute.xlu0 %1115
      %1117 = vrot.lane.b32.xlu0 %v996, 94
      %v1118 = vpop.permute.xlu0 %1117
      %v1119 = vsel %vm544, %v1112, %v1114
      %v1120 = vsel %vm544, %v1114, %v543
      %v1121 = vsel %vm544, %v1116, %v1118
      %v1122 = vsel %vm544, %v1118, %v543
      %1125 = vrot.lane.b32.xlu0 %v266, 111
      %v1126 = vpop.permute.xlu0 %1125
      %1127 = vrot.lane.b32.xlu0 %v267, 111
      %v1128 = vpop.permute.xlu0 %1127
      %v1129 = vsel %vm286, %v1126, %v1128
      %v1130 = vmul.f32 %v955, %v287
      %v1131 = vmul.f32 %v956, %v285
      %v1132 = vmul.f32 %v959, %v287
      %v1133 = vmul.f32 %v960, %v285
      %v1134 = vmul.f32 %v955, %v309
      %v1135 = vmul.f32 %v956, %v307
      %v1136 = vmul.f32 %v959, %v309
      %v1137 = vmul.f32 %v960, %v307
      %v1138 = vmul.f32 %v955, %v331
      %v1139 = vmul.f32 %v956, %v329
      %v1140 = vmul.f32 %v959, %v331
      %v1141 = vmul.f32 %v960, %v329
      %v1142 = vmul.f32 %v955, %v353
      %v1143 = vmul.f32 %v956, %v351
      %v1144 = vmul.f32 %v959, %v353
      %v1145 = vmul.f32 %v960, %v351
      %v1146 = vmul.f32 %v955, %v363
      %v1147 = vmul.f32 %v956, %v367
      %v1148 = vmul.f32 %v959, %v363
      %v1149 = vmul.f32 %v960, %v367
      %v1150 = vmul.f32 %v955, %v381
      %v1151 = vmul.f32 %v956, %v385
      %v1152 = vmul.f32 %v959, %v381
      %v1153 = vmul.f32 %v960, %v385
      %v1154 = vmul.f32 %v955, %v403
      %v1155 = vmul.f32 %v956, %v407
      %v1156 = vmul.f32 %v959, %v403
      %v1157 = vmul.f32 %v960, %v407
      %v1158 = vmul.f32 %v955, %v425
      %v1159 = vmul.f32 %v956, %v429
      %v1160 = vmul.f32 %v959, %v425
      %v1161 = vmul.f32 %v960, %v429
      %v1162 = vmul.f32 %v955, %v447
      %v1163 = vmul.f32 %v956, %v451
      %v1164 = vmul.f32 %v959, %v447
      %v1165 = vmul.f32 %v960, %v451
      %1170 = vrot.lane.b32.xlu0 %v1134, 127
      %v1171 = vpop.permute.xlu0 %1170
      %1172 = vrot.lane.b32.xlu0 %v1135, 127
      %v1173 = vpop.permute.xlu0 %1172
      %1174 = vrot.lane.b32.xlu0 %v1136, 127
      %v1175 = vpop.permute.xlu0 %1174
      %1176 = vrot.lane.b32.xlu0 %v1137, 127
      %v1177 = vpop.permute.xlu0 %1176
      %v1178 = vsel %vm352, %v462, %v1171
      %v1179 = vsel %vm352, %v1171, %v1173
      %v1180 = vsel %vm352, %v462, %v1175
      %v1181 = vsel %vm352, %v1175, %v1177
      %1186 = vrot.lane.b32.xlu0 %v1138, 126
      %v1187 = vpop.permute.xlu0 %1186
      %1188 = vrot.lane.b32.xlu0 %v1139, 126
      %v1189 = vpop.permute.xlu0 %1188
      %1190 = vrot.lane.b32.xlu0 %v1140, 126
      %v1191 = vpop.permute.xlu0 %1190
      %1192 = vrot.lane.b32.xlu0 %v1141, 126
      %v1193 = vpop.permute.xlu0 %1192
      %v1194 = vsel %vm478, %v473, %v1187
      %v1195 = vsel %vm478, %v1187, %v1189
      %v1196 = vsel %vm478, %v473, %v1191
      %v1197 = vsel %vm478, %v1191, %v1193
      %1202 = vrot.lane.b32.xlu0 %v1142, 112
      %v1203 = vpop.permute.xlu0 %1202
      %1204 = vrot.lane.b32.xlu0 %v1143, 112
      %v1205 = vpop.permute.xlu0 %1204
      %1206 = vrot.lane.b32.xlu0 %v1144, 112
      %v1207 = vpop.permute.xlu0 %1206
      %1208 = vrot.lane.b32.xlu0 %v1145, 112
      %v1209 = vpop.permute.xlu0 %1208
      %v1210 = vsel %vm308, %v485, %v1203
      %v1211 = vsel %vm308, %v1203, %v1205
      %v1212 = vsel %vm308, %v485, %v1207
      %v1213 = vsel %vm308, %v1207, %v1209
      %1218 = vrot.lane.b32.xlu0 %v1146, 111
      %v1219 = vpop.permute.xlu0 %1218
      %1220 = vrot.lane.b32.xlu0 %v1147, 111
      %v1221 = vpop.permute.xlu0 %1220
      %1222 = vrot.lane.b32.xlu0 %v1148, 111
      %v1223 = vpop.permute.xlu0 %1222
      %1224 = vrot.lane.b32.xlu0 %v1149, 111
      %v1225 = vpop.permute.xlu0 %1224
      %v1226 = vsel %vm286, %v1219, %v1221
      %v1227 = vsel %vm286, %v1223, %v1225
      %1232 = vrot.lane.b32.xlu0 %v1150, 110
      %v1233 = vpop.permute.xlu0 %1232
      %1234 = vrot.lane.b32.xlu0 %v1151, 110
      %v1235 = vpop.permute.xlu0 %1234
      %1236 = vrot.lane.b32.xlu0 %v1152, 110
      %v1237 = vpop.permute.xlu0 %1236
      %1238 = vrot.lane.b32.xlu0 %v1153, 110
      %v1239 = vpop.permute.xlu0 %1238
      %v1240 = vsel %vm508, %v1233, %v1235
      %v1241 = vsel %vm508, %v1235, %v507
      %v1242 = vsel %vm508, %v1237, %v1239
      %v1243 = vsel %vm508, %v1239, %v507
      %1248 = vrot.lane.b32.xlu0 %v1154, 96
      %v1249 = vpop.permute.xlu0 %1248
      %1250 = vrot.lane.b32.xlu0 %v1155, 96
      %v1251 = vpop.permute.xlu0 %1250
      %1252 = vrot.lane.b32.xlu0 %v1156, 96
      %v1253 = vpop.permute.xlu0 %1252
      %1254 = vrot.lane.b32.xlu0 %v1157, 96
      %v1255 = vpop.permute.xlu0 %1254
      %v1256 = vsel %vm520, %v1249, %v1251
      %v1257 = vsel %vm520, %v1251, %v519
      %v1258 = vsel %vm520, %v1253, %v1255
      %v1259 = vsel %vm520, %v1255, %v519
      %1264 = vrot.lane.b32.xlu0 %v1158, 95
      %v1265 = vpop.permute.xlu0 %1264
      %1266 = vrot.lane.b32.xlu0 %v1159, 95
      %v1267 = vpop.permute.xlu0 %1266
      %1268 = vrot.lane.b32.xlu0 %v1160, 95
      %v1269 = vpop.permute.xlu0 %1268
      %1270 = vrot.lane.b32.xlu0 %v1161, 95
      %v1271 = vpop.permute.xlu0 %1270
      %v1272 = vsel %vm532, %v1265, %v1267
      %v1273 = vsel %vm532, %v1267, %v531
      %v1274 = vsel %vm532, %v1269, %v1271
      %v1275 = vsel %vm532, %v1271, %v531
      %1280 = vrot.lane.b32.xlu0 %v1162, 94
      %v1281 = vpop.permute.xlu0 %1280
      %1282 = vrot.lane.b32.xlu0 %v1163, 94
      %v1283 = vpop.permute.xlu0 %1282
      %1284 = vrot.lane.b32.xlu0 %v1164, 94
      %v1285 = vpop.permute.xlu0 %1284
      %1286 = vrot.lane.b32.xlu0 %v1165, 94
      %v1287 = vpop.permute.xlu0 %1286
      %v1288 = vsel %vm544, %v1281, %v1283
      %v1289 = vsel %vm544, %v1283, %v543
      %v1290 = vsel %vm544, %v1285, %v1287
      %v1291 = vsel %vm544, %v1287, %v543
      %1294 = vrot.lane.b32.xlu0 %v270, 111
      %v1295 = vpop.permute.xlu0 %1294
      %1296 = vrot.lane.b32.xlu0 %v271, 111
      %v1297 = vpop.permute.xlu0 %1296
      %v1298 = vsel %vm286, %v1295, %v1297
      %1303 = vrot.lane.b32.xlu0 %v961, 17
      %v1304 = vpop.permute.xlu0 %1303
      %1305 = vrot.lane.b32.xlu0 %v962, 17
      %v1306 = vpop.permute.xlu0 %1305
      %1307 = vrot.lane.b32.xlu0 %v963, 17
      %v1308 = vpop.permute.xlu0 %1307
      %1309 = vrot.lane.b32.xlu0 %v964, 17
      %v1310 = vpop.permute.xlu0 %1309
      %1311 = vrot.lane.b32.xlu0 %v1009, 17
      %v1312 = vpop.permute.xlu0 %1311
      %1313 = vrot.lane.b32.xlu0 %v1010, 17
      %v1314 = vpop.permute.xlu0 %1313
      %1315 = vrot.lane.b32.xlu0 %v1004, 17
      %v1316 = vpop.permute.xlu0 %1315
      %1317 = vrot.lane.b32.xlu0 %v1011, 17
      %v1318 = vpop.permute.xlu0 %1317
      %1319 = vrot.lane.b32.xlu0 %v1012, 17
      %v1320 = vpop.permute.xlu0 %1319
      %1321 = vrot.lane.b32.xlu0 %v1008, 17
      %v1322 = vpop.permute.xlu0 %1321
      %1323 = vrot.lane.b32.xlu0 %v1025, 17
      %v1324 = vpop.permute.xlu0 %1323
      %1325 = vrot.lane.b32.xlu0 %v1026, 17
      %v1326 = vpop.permute.xlu0 %1325
      %1327 = vrot.lane.b32.xlu0 %v1020, 17
      %v1328 = vpop.permute.xlu0 %1327
      %1329 = vrot.lane.b32.xlu0 %v1027, 17
      %v1330 = vpop.permute.xlu0 %1329
      %1331 = vrot.lane.b32.xlu0 %v1028, 17
      %v1332 = vpop.permute.xlu0 %1331
      %1333 = vrot.lane.b32.xlu0 %v1024, 17
      %v1334 = vpop.permute.xlu0 %1333
      %1335 = vrot.lane.b32.xlu0 %v1041, 17
      %v1336 = vpop.permute.xlu0 %1335
      %1337 = vrot.lane.b32.xlu0 %v1042, 17
      %v1338 = vpop.permute.xlu0 %1337
      %1339 = vrot.lane.b32.xlu0 %v1036, 17
      %v1340 = vpop.permute.xlu0 %1339
      %1341 = vrot.lane.b32.xlu0 %v1043, 17
      %v1342 = vpop.permute.xlu0 %1341
      %1343 = vrot.lane.b32.xlu0 %v1044, 17
      %v1344 = vpop.permute.xlu0 %1343
      %1345 = vrot.lane.b32.xlu0 %v1040, 17
      %v1346 = vpop.permute.xlu0 %1345
      %1347 = vrot.lane.b32.xlu0 %v1050, 17
      %v1348 = vpop.permute.xlu0 %1347
      %1349 = vrot.lane.b32.xlu0 %v1057, 17
      %v1350 = vpop.permute.xlu0 %1349
      %1351 = vrot.lane.b32.xlu0 %v1052, 17
      %v1352 = vpop.permute.xlu0 %1351
      %1353 = vrot.lane.b32.xlu0 %v1054, 17
      %v1354 = vpop.permute.xlu0 %1353
      %1355 = vrot.lane.b32.xlu0 %v1058, 17
      %v1356 = vpop.permute.xlu0 %1355
      %1357 = vrot.lane.b32.xlu0 %v1056, 17
      %v1358 = vpop.permute.xlu0 %1357
      %1359 = vrot.lane.b32.xlu0 %v1064, 17
      %v1360 = vpop.permute.xlu0 %1359
      %1361 = vrot.lane.b32.xlu0 %v1071, 17
      %v1362 = vpop.permute.xlu0 %1361
      %1363 = vrot.lane.b32.xlu0 %v1072, 17
      %v1364 = vpop.permute.xlu0 %1363
      %1365 = vrot.lane.b32.xlu0 %v1068, 17
      %v1366 = vpop.permute.xlu0 %1365
      %1367 = vrot.lane.b32.xlu0 %v1073, 17
      %v1368 = vpop.permute.xlu0 %1367
      %1369 = vrot.lane.b32.xlu0 %v1074, 17
      %v1370 = vpop.permute.xlu0 %1369
      %1371 = vrot.lane.b32.xlu0 %v1080, 17
      %v1372 = vpop.permute.xlu0 %1371
      %1373 = vrot.lane.b32.xlu0 %v1087, 17
      %v1374 = vpop.permute.xlu0 %1373
      %1375 = vrot.lane.b32.xlu0 %v1088, 17
      %v1376 = vpop.permute.xlu0 %1375
      %1377 = vrot.lane.b32.xlu0 %v1084, 17
      %v1378 = vpop.permute.xlu0 %1377
      %1379 = vrot.lane.b32.xlu0 %v1089, 17
      %v1380 = vpop.permute.xlu0 %1379
      %1381 = vrot.lane.b32.xlu0 %v1090, 17
      %v1382 = vpop.permute.xlu0 %1381
      %1383 = vrot.lane.b32.xlu0 %v1096, 17
      %v1384 = vpop.permute.xlu0 %1383
      %1385 = vrot.lane.b32.xlu0 %v1103, 17
      %v1386 = vpop.permute.xlu0 %1385
      %1387 = vrot.lane.b32.xlu0 %v1104, 17
      %v1388 = vpop.permute.xlu0 %1387
      %1389 = vrot.lane.b32.xlu0 %v1100, 17
      %v1390 = vpop.permute.xlu0 %1389
      %1391 = vrot.lane.b32.xlu0 %v1105, 17
      %v1392 = vpop.permute.xlu0 %1391
      %1393 = vrot.lane.b32.xlu0 %v1106, 17
      %v1394 = vpop.permute.xlu0 %1393
      %1395 = vrot.lane.b32.xlu0 %v1112, 17
      %v1396 = vpop.permute.xlu0 %1395
      %1397 = vrot.lane.b32.xlu0 %v1119, 17
      %v1398 = vpop.permute.xlu0 %1397
      %1399 = vrot.lane.b32.xlu0 %v1120, 17
      %v1400 = vpop.permute.xlu0 %1399
      %1401 = vrot.lane.b32.xlu0 %v1116, 17
      %v1402 = vpop.permute.xlu0 %1401
      %1403 = vrot.lane.b32.xlu0 %v1121, 17
      %v1404 = vpop.permute.xlu0 %1403
      %1405 = vrot.lane.b32.xlu0 %v1122, 17
      %v1406 = vpop.permute.xlu0 %1405
      %1407 = vrot.lane.b32.xlu0 %v1126, 17
      %v1408 = vpop.permute.xlu0 %1407
      %1409 = vrot.lane.b32.xlu0 %v1129, 17
      %v1410 = vpop.permute.xlu0 %1409
      %1411 = vrot.lane.b32.xlu0 %v1128, 17
      %v1412 = vpop.permute.xlu0 %1411
      %v1413 = vsel %vm450, %v632, %v1304
      %v1414 = vsel %vm450, %v1304, %v1306
      %v1415 = vsel %vm450, %v632, %v1308
      %v1416 = vsel %vm450, %v1308, %v1310
      %v1417 = vsel %vm450, %v1312, %v1314
      %v1418 = vsel %vm450, %v1314, %v1316
      %v1419 = vsel %vm450, %v1318, %v1320
      %v1420 = vsel %vm450, %v1320, %v1322
      %v1421 = vsel %vm450, %v1324, %v1326
      %v1422 = vsel %vm450, %v1326, %v1328
      %v1423 = vsel %vm450, %v1330, %v1332
      %v1424 = vsel %vm450, %v1332, %v1334
      %v1425 = vsel %vm450, %v1336, %v1338
      %v1426 = vsel %vm450, %v1338, %v1340
      %v1427 = vsel %vm450, %v1342, %v1344
      %v1428 = vsel %vm450, %v1344, %v1346
      %v1429 = vsel %vm450, %v1348, %v1350
      %v1430 = vsel %vm450, %v1350, %v1352
      %v1431 = vsel %vm450, %v1354, %v1356
      %v1432 = vsel %vm450, %v1356, %v1358
      %v1433 = vsel %vm450, %v1360, %v1362
      %v1434 = vsel %vm450, %v1362, %v1364
      %v1435 = vsel %vm450, %v1366, %v1368
      %v1436 = vsel %vm450, %v1368, %v1370
      %v1437 = vsel %vm450, %v1372, %v1374
      %v1438 = vsel %vm450, %v1374, %v1376
      %v1439 = vsel %vm450, %v1378, %v1380
      %v1440 = vsel %vm450, %v1380, %v1382
      %v1441 = vsel %vm450, %v1384, %v1386
      %v1442 = vsel %vm450, %v1386, %v1388
      %v1443 = vsel %vm450, %v1390, %v1392
      %v1444 = vsel %vm450, %v1392, %v1394
      %v1445 = vsel %vm450, %v1396, %v1398
      %v1446 = vsel %vm450, %v1398, %v1400
      %v1447 = vsel %vm450, %v1402, %v1404
      %v1448 = vsel %vm450, %v1404, %v1406
      %v1449 = vsel %vm450, %v1408, %v1410
      %v1450 = vsel %vm450, %v1410, %v1412
      %1493 = vrot.lane.b32.xlu0 %v1130, 17
      %v1494 = vpop.permute.xlu0 %1493
      %1495 = vrot.lane.b32.xlu0 %v1131, 17
      %v1496 = vpop.permute.xlu0 %1495
      %1497 = vrot.lane.b32.xlu0 %v1132, 17
      %v1498 = vpop.permute.xlu0 %1497
      %1499 = vrot.lane.b32.xlu0 %v1133, 17
      %v1500 = vpop.permute.xlu0 %1499
      %1501 = vrot.lane.b32.xlu0 %v1178, 17
      %v1502 = vpop.permute.xlu0 %1501
      %1503 = vrot.lane.b32.xlu0 %v1179, 17
      %v1504 = vpop.permute.xlu0 %1503
      %1505 = vrot.lane.b32.xlu0 %v1173, 17
      %v1506 = vpop.permute.xlu0 %1505
      %1507 = vrot.lane.b32.xlu0 %v1180, 17
      %v1508 = vpop.permute.xlu0 %1507
      %1509 = vrot.lane.b32.xlu0 %v1181, 17
      %v1510 = vpop.permute.xlu0 %1509
      %1511 = vrot.lane.b32.xlu0 %v1177, 17
      %v1512 = vpop.permute.xlu0 %1511
      %1513 = vrot.lane.b32.xlu0 %v1194, 17
      %v1514 = vpop.permute.xlu0 %1513
      %1515 = vrot.lane.b32.xlu0 %v1195, 17
      %v1516 = vpop.permute.xlu0 %1515
      %1517 = vrot.lane.b32.xlu0 %v1189, 17
      %v1518 = vpop.permute.xlu0 %1517
      %1519 = vrot.lane.b32.xlu0 %v1196, 17
      %v1520 = vpop.permute.xlu0 %1519
      %1521 = vrot.lane.b32.xlu0 %v1197, 17
      %v1522 = vpop.permute.xlu0 %1521
      %1523 = vrot.lane.b32.xlu0 %v1193, 17
      %v1524 = vpop.permute.xlu0 %1523
      %1525 = vrot.lane.b32.xlu0 %v1210, 17
      %v1526 = vpop.permute.xlu0 %1525
      %1527 = vrot.lane.b32.xlu0 %v1211, 17
      %v1528 = vpop.permute.xlu0 %1527
      %1529 = vrot.lane.b32.xlu0 %v1205, 17
      %v1530 = vpop.permute.xlu0 %1529
      %1531 = vrot.lane.b32.xlu0 %v1212, 17
      %v1532 = vpop.permute.xlu0 %1531
      %1533 = vrot.lane.b32.xlu0 %v1213, 17
      %v1534 = vpop.permute.xlu0 %1533
      %1535 = vrot.lane.b32.xlu0 %v1209, 17
      %v1536 = vpop.permute.xlu0 %1535
      %1537 = vrot.lane.b32.xlu0 %v1219, 17
      %v1538 = vpop.permute.xlu0 %1537
      %1539 = vrot.lane.b32.xlu0 %v1226, 17
      %v1540 = vpop.permute.xlu0 %1539
      %1541 = vrot.lane.b32.xlu0 %v1221, 17
      %v1542 = vpop.permute.xlu0 %1541
      %1543 = vrot.lane.b32.xlu0 %v1223, 17
      %v1544 = vpop.permute.xlu0 %1543
      %1545 = vrot.lane.b32.xlu0 %v1227, 17
      %v1546 = vpop.permute.xlu0 %1545
      %1547 = vrot.lane.b32.xlu0 %v1225, 17
      %v1548 = vpop.permute.xlu0 %1547
      %1549 = vrot.lane.b32.xlu0 %v1233, 17
      %v1550 = vpop.permute.xlu0 %1549
      %1551 = vrot.lane.b32.xlu0 %v1240, 17
      %v1552 = vpop.permute.xlu0 %1551
      %1553 = vrot.lane.b32.xlu0 %v1241, 17
      %v1554 = vpop.permute.xlu0 %1553
      %1555 = vrot.lane.b32.xlu0 %v1237, 17
      %v1556 = vpop.permute.xlu0 %1555
      %1557 = vrot.lane.b32.xlu0 %v1242, 17
      %v1558 = vpop.permute.xlu0 %1557
      %1559 = vrot.lane.b32.xlu0 %v1243, 17
      %v1560 = vpop.permute.xlu0 %1559
      %1561 = vrot.lane.b32.xlu0 %v1249, 17
      %v1562 = vpop.permute.xlu0 %1561
      %1563 = vrot.lane.b32.xlu0 %v1256, 17
      %v1564 = vpop.permute.xlu0 %1563
      %1565 = vrot.lane.b32.xlu0 %v1257, 17
      %v1566 = vpop.permute.xlu0 %1565
      %1567 = vrot.lane.b32.xlu0 %v1253, 17
      %v1568 = vpop.permute.xlu0 %1567
      %1569 = vrot.lane.b32.xlu0 %v1258, 17
      %v1570 = vpop.permute.xlu0 %1569
      %1571 = vrot.lane.b32.xlu0 %v1259, 17
      %v1572 = vpop.permute.xlu0 %1571
      %1573 = vrot.lane.b32.xlu0 %v1265, 17
      %v1574 = vpop.permute.xlu0 %1573
      %1575 = vrot.lane.b32.xlu0 %v1272, 17
      %v1576 = vpop.permute.xlu0 %1575
      %1577 = vrot.lane.b32.xlu0 %v1273, 17
      %v1578 = vpop.permute.xlu0 %1577
      %1579 = vrot.lane.b32.xlu0 %v1269, 17
      %v1580 = vpop.permute.xlu0 %1579
      %1581 = vrot.lane.b32.xlu0 %v1274, 17
      %v1582 = vpop.permute.xlu0 %1581
      %1583 = vrot.lane.b32.xlu0 %v1275, 17
      %v1584 = vpop.permute.xlu0 %1583
      %1585 = vrot.lane.b32.xlu0 %v1281, 17
      %v1586 = vpop.permute.xlu0 %1585
      %1587 = vrot.lane.b32.xlu0 %v1288, 17
      %v1588 = vpop.permute.xlu0 %1587
      %1589 = vrot.lane.b32.xlu0 %v1289, 17
      %v1590 = vpop.permute.xlu0 %1589
      %1591 = vrot.lane.b32.xlu0 %v1285, 17
      %v1592 = vpop.permute.xlu0 %1591
      %1593 = vrot.lane.b32.xlu0 %v1290, 17
      %v1594 = vpop.permute.xlu0 %1593
      %1595 = vrot.lane.b32.xlu0 %v1291, 17
      %v1596 = vpop.permute.xlu0 %1595
      %1597 = vrot.lane.b32.xlu0 %v1295, 17
      %v1598 = vpop.permute.xlu0 %1597
      %1599 = vrot.lane.b32.xlu0 %v1298, 17
      %v1600 = vpop.permute.xlu0 %1599
      %1601 = vrot.lane.b32.xlu0 %v1297, 17
      %v1602 = vpop.permute.xlu0 %1601
      %v1603 = vsel %vm450, %v632, %v1494
      %v1604 = vsel %vm450, %v1494, %v1496
      %v1605 = vsel %vm450, %v632, %v1498
      %v1606 = vsel %vm450, %v1498, %v1500
      %v1607 = vsel %vm450, %v1502, %v1504
      %v1608 = vsel %vm450, %v1504, %v1506
      %v1609 = vsel %vm450, %v1508, %v1510
      %v1610 = vsel %vm450, %v1510, %v1512
      %v1611 = vsel %vm450, %v1514, %v1516
      %v1612 = vsel %vm450, %v1516, %v1518
      %v1613 = vsel %vm450, %v1520, %v1522
      %v1614 = vsel %vm450, %v1522, %v1524
      %v1615 = vsel %vm450, %v1526, %v1528
      %v1616 = vsel %vm450, %v1528, %v1530
      %v1617 = vsel %vm450, %v1532, %v1534
      %v1618 = vsel %vm450, %v1534, %v1536
      %v1619 = vsel %vm450, %v1538, %v1540
      %v1620 = vsel %vm450, %v1540, %v1542
      %v1621 = vsel %vm450, %v1544, %v1546
      %v1622 = vsel %vm450, %v1546, %v1548
      %v1623 = vsel %vm450, %v1550, %v1552
      %v1624 = vsel %vm450, %v1552, %v1554
      %v1625 = vsel %vm450, %v1556, %v1558
      %v1626 = vsel %vm450, %v1558, %v1560
      %v1627 = vsel %vm450, %v1562, %v1564
      %v1628 = vsel %vm450, %v1564, %v1566
      %v1629 = vsel %vm450, %v1568, %v1570
      %v1630 = vsel %vm450, %v1570, %v1572
      %v1631 = vsel %vm450, %v1574, %v1576
      %v1632 = vsel %vm450, %v1576, %v1578
      %v1633 = vsel %vm450, %v1580, %v1582
      %v1634 = vsel %vm450, %v1582, %v1584
      %v1635 = vsel %vm450, %v1586, %v1588
      %v1636 = vsel %vm450, %v1588, %v1590
      %v1637 = vsel %vm450, %v1592, %v1594
      %v1638 = vsel %vm450, %v1594, %v1596
      %v1639 = vsel %vm450, %v1598, %v1600
      %v1640 = vsel %vm450, %v1600, %v1602
      %v1679 = vld [vmem:[%s4] sm:$0xff]
      %v1680 = vld [vmem:[%s4 + $0x8] sm:$0xff]
      %v1681 = vpack.c.bf16 %v1415, %v1413
      %v1682 = vpack.c.bf16 %v1416, %v1414
      %v1683 = vpack.c.bf16 %v1605, %v1603
      %v1684 = vpack.c.bf16 %v1606, %v1604
      %v1685 = vpack.c.bf16 %v1419, %v1417
      %v1686 = vpack.c.bf16 %v1420, %v1418
      %v1687 = vpack.c.bf16 %v1609, %v1607
      %v1688 = vpack.c.bf16 %v1610, %v1608
      %v1689 = vpack.c.bf16 %v1423, %v1421
      %v1690 = vpack.c.bf16 %v1424, %v1422
      %v1691 = vpack.c.bf16 %v1613, %v1611
      %v1692 = vpack.c.bf16 %v1614, %v1612
      %v1693 = vpack.c.bf16 %v1427, %v1425
      %v1694 = vpack.c.bf16 %v1428, %v1426
      %v1695 = vpack.c.bf16 %v1617, %v1615
      %v1696 = vpack.c.bf16 %v1618, %v1616
      %v1697 = vpack.c.bf16 %v1431, %v1429
      %v1698 = vpack.c.bf16 %v1432, %v1430
      %v1699 = vpack.c.bf16 %v1621, %v1619
      %v1700 = vpack.c.bf16 %v1622, %v1620
      %v1701 = vpack.c.bf16 %v1435, %v1433
      %v1702 = vpack.c.bf16 %v1436, %v1434
      %v1703 = vpack.c.bf16 %v1625, %v1623
      %v1704 = vpack.c.bf16 %v1626, %v1624
      %v1705 = vpack.c.bf16 %v1439, %v1437
      %v1706 = vpack.c.bf16 %v1440, %v1438
      %v1707 = vpack.c.bf16 %v1629, %v1627
      %v1708 = vpack.c.bf16 %v1630, %v1628
      %v1709 = vpack.c.bf16 %v1443, %v1441
      %v1710 = vpack.c.bf16 %v1444, %v1442
      %v1711 = vpack.c.bf16 %v1633, %v1631
      %v1712 = vpack.c.bf16 %v1634, %v1632
      %v1713 = vpack.c.bf16 %v1447, %v1445
      %v1714 = vpack.c.bf16 %v1448, %v1446
      %v1715 = vpack.c.bf16 %v1637, %v1635
      %v1716 = vpack.c.bf16 %v1638, %v1636
      %v1717 = vpack.c.bf16 %v1449, %v1449
      %v1718 = vpack.c.bf16 %v1450, %v1450
      %v1719 = vpack.c.bf16 %v1639, %v1639
      %v1720 = vpack.c.bf16 %v1640, %v1640
      %v1721 = vld [vmem:[%s5] sm:$0xff]
      %v1722 = vld [vmem:[%s5 + $0x8] sm:$0xff]
      %1724 = vset.pattern.permute.xlu0 0
      %1725 = vperm.xlu0 %1724, %v1721
      %v1726 = vpop.permute.xlu0 %1725
      %1729 = vset.pattern.permute.xlu0 0
      %1730 = vperm.xlu0 %1729, %v1722
      %v1731 = vpop.permute.xlu0 %1730
      %v1735 = vunpack.c.l.b16 %v1679
      %v1736 = vunpack.c.h.b16 %v1679
      %v1737 = vunpack.c.l.b16 %v1680
      %v1738 = vunpack.c.h.b16 %v1680
      %v1739 = vpack.c.b16 %v1737, %v1735
      %v1740 = vpack.c.b16 %v1738, %v1736
      %vm1742 = vcmask 195584
      %v1744 = vsel %vm1742, %v1740, 0
      %v1747 = vsel %vm854, %v1717, 0
      %v1750 = vsel %vm854, %v1718, 0
      %v1753 = vsel %vm854, %v1719, 0
      %v1756 = vsel %vm854, %v1720, 0
      %1758 = vmatprep.subr.bf16.mxu0 %v1682
      %1759 = vmatpush1.bf16.msra.mxu0 %v1681
      %1760 = vmatprep.subr.bf16.mxu0 %v1686
      %1761 = vmatpush1.bf16.msra.mxu0 %v1685
      %1762 = vmatprep.subr.bf16.mxu0 %v1690
      %1763 = vmatpush1.bf16.msra.mxu0 %v1689
      %1764 = vmatprep.subr.bf16.mxu0 %v1694
      %1765 = vmatpush1.bf16.msra.mxu0 %v1693
      %1766 = vmatprep.subr.bf16.mxu0 %v1698
      %1767 = vmatpush1.bf16.msra.mxu0 %v1697
      %1768 = vmatprep.subr.bf16.mxu0 %v1702
      %1769 = vmatpush1.bf16.msra.mxu0 %v1701
      %1770 = vmatprep.subr.bf16.mxu0 %v1706
      %1771 = vmatpush1.bf16.msra.mxu0 %v1705
      %1772 = vmatprep.subr.bf16.mxu0 %v1710
      %1773 = vmatpush1.bf16.msra.mxu0 %v1709
      %1774 = vmatprep.subr.bf16.mxu0 %v1714
      %1775 = vmatpush1.bf16.msra.mxu0 %v1713
      %1776 = vmatprep.subr.bf16.mxu0 %v1750
      %1777 = vmatpush1.bf16.msra.mxu0 %v1747
      %1778 = vmatprep.subr.bf16.mxu0 0
      %1779 = vmatpush1.bf16.msra.mxu0 0
      %1780 = vmatprep.subr.bf16.mxu0 0
      %1781 = vmatpush1.bf16.msra.mxu0 0
      %1782 = vmatprep.subr.bf16.mxu0 0
      %1783 = vmatpush1.bf16.msra.mxu0 0
      %1784 = vmatprep.subr.bf16.mxu0 0
      %1785 = vmatpush1.bf16.msra.mxu0 0
      %1786 = vmatprep.subr.bf16.mxu0 0
      %1787 = vmatpush1.bf16.msra.mxu0 0
      %1788 = vmatprep.subr.bf16.mxu0 0
      %1789 = vmatpush1.bf16.msra.mxu0 0
      %1790 = vmatprep.mubr.bf16.mxu0 %v1744
      %1791 = vmatmul.mubr.bf16.gmra.mrb[0].mxu0 %v1739
      %v1792 = vpop.f32.mrb[0].mxu0
      %v1793 = vadd.f32 %v1726, %v1792
      %v1794 = vpop.f32.mrb[0].mxu0
      %v1795 = vadd.f32 %v1726, %v1794
      %v1796 = vpop.f32.mrb[0].mxu0
      %v1797 = vadd.f32 %v1731, %v1796
      %v1798 = vpop.f32.mrb[0].mxu0
      %v1799 = vadd.f32 %v1731, %v1798
      %1800 = vdwg.mxu0
      %1801 = vmatprep.subr.bf16.mxu0 %v1684
      %1802 = vmatpush1.bf16.msra.mxu0 %v1683
      %1803 = vmatprep.subr.bf16.mxu0 %v1688
      %1804 = vmatpush1.bf16.msra.mxu0 %v1687
      %1805 = vmatprep.subr.bf16.mxu0 %v1692
      %1806 = vmatpush1.bf16.msra.mxu0 %v1691
      %1807 = vmatprep.subr.bf16.mxu0 %v1696
      %1808 = vmatpush1.bf16.msra.mxu0 %v1695
      %1809 = vmatprep.subr.bf16.mxu0 %v1700
      %1810 = vmatpush1.bf16.msra.mxu0 %v1699
      %1811 = vmatprep.subr.bf16.mxu0 %v1704
      %1812 = vmatpush1.bf16.msra.mxu0 %v1703
      %1813 = vmatprep.subr.bf16.mxu0 %v1708
      %1814 = vmatpush1.bf16.msra.mxu0 %v1707
      %1815 = vmatprep.subr.bf16.mxu0 %v1712
      %1816 = vmatpush1.bf16.msra.mxu0 %v1711
      %1817 = vmatprep.subr.bf16.mxu0 %v1716
      %1818 = vmatpush1.bf16.msra.mxu0 %v1715
      %1819 = vmatprep.subr.bf16.mxu0 %v1756
      %1820 = vmatpush1.bf16.msra.mxu0 %v1753
      %1821 = vmatprep.subr.bf16.mxu0 0
      %1822 = vmatpush1.bf16.msra.mxu0 0
      %1823 = vmatprep.subr.bf16.mxu0 0
      %1824 = vmatpush1.bf16.msra.mxu0 0
      %1825 = vmatprep.subr.bf16.mxu0 0
      %1826 = vmatpush1.bf16.msra.mxu0 0
      %1827 = vmatprep.subr.bf16.mxu0 0
      %1828 = vmatpush1.bf16.msra.mxu0 0
      %1829 = vmatprep.subr.bf16.mxu0 0
      %1830 = vmatpush1.bf16.msra.mxu0 0
      %1831 = vmatprep.subr.bf16.mxu0 0
      %1832 = vmatpush1.bf16.msra.mxu0 0
      %1833 = vmatprep.mubr.bf16.mxu0 %v1744
      %1834 = vmatmul.mubr.bf16.gmra.mrb[0].mxu0 %v1739
      %v1835 = vpop.f32.mrb[0].mxu0
      %v1836 = vadd.f32 %v1726, %v1835
      %v1837 = vpop.f32.mrb[0].mxu0
      %v1838 = vadd.f32 %v1726, %v1837
      %v1839 = vpop.f32.mrb[0].mxu0
      %v1840 = vadd.f32 %v1731, %v1839
      %v1841 = vpop.f32.mrb[0].mxu0
      %v1842 = vadd.f32 %v1731, %v1841
      %1843 = vdwg.mxu0
      %v1844 = vmax.f32 %v1793, 0.0
      %v1845 = vmax.f32 %v1795, 0.0
      %v1846 = vmax.f32 %v1836, 0.0
      %v1847 = vmax.f32 %v1838, 0.0
      %v1848 = vmax.f32 %v1797, 0.0
      %v1849 = vmax.f32 %v1799, 0.0
      %v1850 = vmax.f32 %v1840, 0.0
      %v1851 = vmax.f32 %v1842, 0.0
      %v1852 = vmul.f32 %v1844, %v363
      %v1853 = vmul.f32 %v1845, %v367
      %v1854 = vmul.f32 %v1848, %v363
      %v1855 = vmul.f32 %v1849, %v367
      %1856 = vst [vmem:[%s258] sm:$0xff] %v1852
      %1857 = vst [vmem:[%s258 + $0x8] sm:$0xff] %v1853
      %1858 = vst [vmem:[%s258 + $0x10] sm:$0xff] %v1854
      %1859 = vst [vmem:[%s258 + $0x18] sm:$0xff] %v1855
      %v1860 = vmul.f32 %v1846, %v363
      %v1861 = vmul.f32 %v1847, %v367
      %v1862 = vmul.f32 %v1850, %v363
      %v1863 = vmul.f32 %v1851, %v367
      %s1864 = scalar_lea.vmem %s258, 32
      %1865 = vst [vmem:[%s1864] sm:$0xff] %v1860
      %1866 = vst [vmem:[%s1864 + $0x8] sm:$0xff] %v1861
      %1867 = vst [vmem:[%s1864 + $0x10] sm:$0xff] %v1862
      %1868 = vst [vmem:[%s1864 + $0x18] sm:$0xff] %v1863
      %s1869 = smul.u32 2, %s17
      %p1870 = scmp.lt.s32.totalorder %s1869, 3
      %s1871 = scalar_select %p1870, %s1869, 3
      %s1872 = smul.addr %s1871, 4
      %s1873 = smul.addr %s1872, 8
      %s1874 = scalar_lea.vmem %s6, %s1873
      // Predicated region
      $region45: #{basic_res_block.1} parent=43 // pred_check
        %p1875 = pneg %p166
      $region46: #{basic_res_block.1} parent=43 // pred_check_branch
        %1877 = sbr.rel (%p1875) target = $region48
      $region47: #{basic_res_block.1} parent=43 // pred_region
        %s1878 = smul.u32 2, %s17
      $region48: #{basic_res_block.1} parent=43 // pred_fallthru
        _
    $region44: #{basic_res_block.1} parent=5 // pred_fallthru
      _
    %p1879 = scmp.le.s32.totalorder 2, %s12
    // Predicated region
    $region49: #{basic_res_block.1} parent=5 // pred_check
      %p1880 = pneg %p1879
    $region50: #{basic_res_block.1} parent=5 // pred_check_branch
      %1882 = sbr.rel (%p1880) target = $region52
    $region51: #{basic_res_block.1} parent=5 // pred_region
      %s1883 = ssub.s32 %s12, 2
      // Predicated region
      $region53: #{basic_res_block.1} parent=51 // pred_check
        %p1884 = pneg %p172
      $region54: #{basic_res_block.1} parent=51 // pred_check_branch
        %1886 = sbr.rel (%p1884) target = $region56
      $region55: #{basic_res_block.1} parent=51 // pred_region
        %s1887 = smul.u32 2, %s18
        %p1888 = scmp.lt.s32.totalorder %s1887, 3
        %s1889 = scalar_select %p1888, %s1887, 3
        %s1890 = smul.addr %s1889, 4
        %s1891 = smul.addr %s1890, 8
        %s1892 = scalar_lea.vmem %s6, %s1891
      $region56: #{basic_res_block.1} parent=51 // pred_fallthru
        _
    $region52: #{basic_res_block.1} parent=5 // pred_fallthru
      _
  $region6: #{basic_res_block.1} parent=0 // loop_footer
    %s16 = sadd.s32 1, %s12
  $region7: #{basic_res_block.1} parent=0 // loop_footer_branch
    %11 = sbr.rel target = $region3
  $region8: #{basic_res_block.1} parent=0 // loop_exit
    _

</llo_original>
